<compile_context>
chip_gen: v6e
topology: v6e:2x2x1
jax: 0.10.0
libtpu: 0.0.40
codegen_flags: <defaults>
</compile_context>

<pallas_src>
import math

import jax
import jax.numpy as jnp
from jax.experimental import pallas as pl
from jax.experimental.pallas import tpu as pltpu


def mlp_g_kernel(x_ref,
                 w1_ref, b1_ref,
                 w2_ref, b2_ref,
                 w3_ref, b3_ref,
                 w4_ref, b4_ref,
                 o_ref,
                 h_ref):
    """Fused (Linear->ReLU)x3 -> Linear for one (split, batch-tile, out-tile) point.

    h_ref (VMEM scratch, compute dtype) caches the layer-3 activations for the
    current (split, batch tile); it is computed once at j == 0 and reused for
    every layer-4 output tile. This is only correct while j is the innermost
    "arbitrary" grid axis (never sharded across cores).
    """
    j = pl.program_id(2)

    @pl.when(j == 0)
    def _():
        cdt = w1_ref.dtype  # MXU compute dtype (f32 or bf16); casts are no-ops if equal
        x = x_ref[...].astype(cdt)

        # Layer 1: Linear(nz, ngf) + ReLU (bias/ReLU in f32)
        h = jnp.dot(x, w1_ref[...], preferred_element_type=jnp.float32)
        h = jnp.maximum(h + b1_ref[...].astype(jnp.float32), 0.0)

        # Layer 2: Linear(ngf, ngf) + ReLU
        h = jnp.dot(h.astype(cdt), w2_ref[...], preferred_element_type=jnp.float32)
        h = jnp.maximum(h + b2_ref[...].astype(jnp.float32), 0.0)

        # Layer 3: Linear(ngf, ngf) + ReLU
        h = jnp.dot(h.astype(cdt), w3_ref[...], preferred_element_type=jnp.float32)
        h = jnp.maximum(h + b3_ref[...].astype(jnp.float32), 0.0)

        # Cache in the compute dtype -> no per-output-tile cast below.
        h_ref[...] = h.astype(h_ref.dtype)

    # Layer 4 (this output-feature tile): Linear(ngf, tn), no activation.
    out = jnp.dot(h_ref[...], w4_ref[...], preferred_element_type=jnp.float32)
    out = out + b4_ref[...].astype(jnp.float32)
    o_ref[...] = out.astype(o_ref.dtype)


def init_mlp_g_params(key, nz, ngf, nc, isize, dtype=jnp.float32):
    """Init mirroring torch.nn.Linear default U[-1/sqrt(fan_in), +1/sqrt(fan_in)].

    Weights are stored transposed relative to PyTorch: (in_features, out_features).
    Biases are stored as (1, out_features). bf16 weights are the recommended
    matmul configuration on all generations (mandatory for good v5e perf).
    """
    dims = [(nz, ngf), (ngf, ngf), (ngf, ngf), (ngf, nc * isize * isize)]
    params = []
    for fan_in, fan_out in dims:
        key, kw, kb = jax.random.split(key, 3)
        bound = 1.0 / math.sqrt(fan_in)
        w = jax.random.uniform(kw, (fan_in, fan_out), jnp.float32,
                               minval=-bound, maxval=bound).astype(dtype)
        b = jax.random.uniform(kb, (1, fan_out), jnp.float32,
                               minval=-bound, maxval=bound).astype(dtype)
        params.append((w, b))
    return params


def _round_up(x, m):
    return ((x + m - 1) // m) * m


def _nbytes(arr):
    return int(arr.size) * jnp.dtype(arr.dtype).itemsize


def _vmem_capacity_bytes():
    """Physical per-core VMEM (generation-aware); conservative v7x default."""
    try:
        cap = getattr(pltpu.get_tpu_info(), "vmem_capacity_bytes", None)
        if cap:
            return int(cap)
    except Exception:
        pass
    return 64 << 20


def _pick_out_tile(out_ru, max_tile):
    """Largest multiple-of-128 tile <= max_tile that minimizes padding of out_ru."""
    max_t = max(128, min((max_tile // 128) * 128, out_ru))
    best_tn, best_pad = 128, _round_up(out_ru, 128)
    for t in range(max_t, 127, -128):
        padded = _round_up(out_ru, t)
        if padded < best_pad or (padded == best_pad and t > best_tn):
            best_tn, best_pad = t, padded
    return best_tn, best_pad


def mlp_g_forward(z, params, nc, isize, *, tile_b=512, max_out_tile=2048,
                  out_dtype=None):
    """z: (B, nz, 1, 1) or (B, nz). Returns (B, nc, isize, isize)."""
    B = z.shape[0]
    nz = z.shape[1]
    x = z.reshape(B, nz)  # == input.view(input.size(0), input.size(1))
    out_dtype = jnp.dtype(out_dtype if out_dtype is not None else z.dtype)

    (w1, b1), (w2, b2), (w3, b3), (w4, b4) = params
    ngf = w1.shape[1]
    out_dim = nc * isize * isize
    assert w4.shape == (ngf, out_dim), (w4.shape, (ngf, out_dim))
    w_dtype = w1.dtype
    assert all(w.dtype == w_dtype for w, _ in params), "weights must share one dtype"

    w_isz = jnp.dtype(w_dtype).itemsize
    x_isz = jnp.dtype(x.dtype).itemsize
    o_isz = out_dtype.itemsize

    # ---- tile selection ---------------------------------------------------
    # Batch: as few batch tiles as possible (every extra batch tile re-streams
    # ALL of w4 from HBM); tiles are multiples of 16 rows (bf16 sublane packing).
    n_b = pl.cdiv(B, max(16, tile_b))
    tb = _round_up(pl.cdiv(B, n_b), 16)

    # Layer-4 output features: lane-dense multiple-of-128 tiles; out_dim is
    # zero-padded up to a tile multiple (unmasked stores, bounded tile size).
    out_ru = _round_up(out_dim, 128)
    tn, out_dim_pad = _pick_out_tile(out_ru, max_out_tile)

    resident_bytes = (_nbytes(w1) + _nbytes(b1) + _nbytes(w2) + _nbytes(b2)
                      + _nbytes(w3) + _nbytes(b3))

    def vmem_est(tb_, tn_, resident_factor):
        streamed = 2 * (tb_ * nz * x_isz       # x tile (double-buffered)
                        + ngf * tn_ * w_isz    # w4 tile
                        + tn_ * w_isz          # b4 tile
                        + tb_ * tn_ * o_isz)   # out tile
        scratch = tb_ * ngf * w_isz            # hidden-activation cache (compute dtype)
        return resident_factor * resident_bytes + streamed + scratch

    # Generation-aware budget: physical VMEM minus ~8 MiB headroom for
    # compiler-internal scratch (~56 MiB on v7x, ~120 MiB on v5e/v6e).
    budget = max(_vmem_capacity_bytes() - (8 << 20), 16 << 20)

    # Shrink tn first (keep the batch tile big), then tb, until the worst-case
    # (double-buffered residents) estimate fits the budget.
    while vmem_est(tb, tn, 2) + (4 << 20) > budget:
        if tn > 128:
            tn = max(128, ((tn // 2) // 128) * 128)
        elif tb > 16:
            tb = max(16, ((tb // 2) // 16) * 16)
        else:
            break
    out_dim_pad = _round_up(out_ru, tn)
    b_pad = _round_up(B, tb)

    # v7x megacore: split the layer-4 output-tile range over a leading "parallel"
    # axis so both TensorCores have work even when the batch is a single tile.
    # Layers 1-3 are recomputed per split (cheap relative to the w4 matmul).
    n_j_total = out_dim_pad // tn
    n_splits = 2 if (n_j_total >= 2 and n_j_total % 2 == 0) else 1
    npj = n_j_total // n_splits
    grid = (n_splits, b_pad // tb, npj)

    # ---- zero padding (sliced off after the call) ---------------------------
    if b_pad != B:
        x = jnp.pad(x, ((0, b_pad - B), (0, 0)))
    if out_dim_pad != out_dim:
        w4 = jnp.pad(w4, ((0, 0), (0, out_dim_pad - out_dim)))
        b4 = jnp.pad(b4, ((0, 0), (0, out_dim_pad - out_dim)))

    def run(single_buffer_residents):
        def resident(shape):
            idx = lambda *_: (0,) * len(shape)
            if single_buffer_residents:
                # Block index never changes -> a second pipeline buffer is waste.
                return pl.BlockSpec(shape, idx, pipeline_mode=pl.Buffered(1))
            return pl.BlockSpec(shape, idx)

        res_factor = 1 if single_buffer_residents else 2
        vmem_limit = int(min(max(vmem_est(tb, tn, res_factor) + (4 << 20),
                                 32 << 20), budget))

        out_flat = pl.pallas_call(
            mlp_g_kernel,
            out_shape=jax.ShapeDtypeStruct((b_pad, out_dim_pad), out_dtype),
            grid_spec=pltpu.PrefetchScalarGridSpec(
                num_scalar_prefetch=0,
                grid=grid,
                in_specs=[
                    pl.BlockSpec((tb, nz), lambda c, i, j: (i, 0)),        # x batch tile
                    resident(w1.shape), resident(b1.shape),                 # layers 1-3:
                    resident(w2.shape), resident(b2.shape),                 #   VMEM-resident
                    resident(w3.shape), resident(b3.shape),
                    pl.BlockSpec((ngf, tn), lambda c, i, j: (0, c * npj + j)),  # w4 tile
                    pl.BlockSpec((1, tn), lambda c, i, j: (0, c * npj + j)),    # b4 tile
                ],
                out_specs=pl.BlockSpec((tb, tn), lambda c, i, j: (i, c * npj + j)),
                scratch_shapes=[pltpu.VMEM((tb, ngf), w_dtype)],  # h cache, compute dtype
            ),
            compiler_params=pltpu.CompilerParams(
                # INVARIANT: the h-cache (layers 1-3 only at j == 0) is correct only
                # while j stays the innermost "arbitrary" axis (never core-sharded).
                dimension_semantics=("parallel", "parallel", "arbitrary"),
                vmem_limit_bytes=vmem_limit,
            ),
        )(x, w1, b1, w2, b2, w3, b3, w4, b4)
        return jax.block_until_ready(out_flat)

    try:
        out_flat = run(single_buffer_residents=True)
    except Exception:
        # pl.Buffered(1) not supported by this jax/Mosaic build: fall back to the
        # default double-buffered resident weights (correct, slightly more VMEM).
        out_flat = run(single_buffer_residents=False)

    return out_flat[:B, :out_dim].reshape(B, nc, isize, isize)


def mlp_g_reference(z, params, nc, isize):
    """Pure-JAX reference with matching dtype handling (for verification)."""
    B = z.shape[0]
    h = z.reshape(B, z.shape[1])
    n_layers = len(params)
    for idx, (w, b) in enumerate(params):
        h = jnp.dot(h.astype(w.dtype), w, preferred_element_type=jnp.float32)
        h = h + b.astype(jnp.float32)
        if idx < n_layers - 1:
            h = jnp.maximum(h, 0.0)
    return h.astype(z.dtype).reshape(B, nc, isize, isize)


if __name__ == "__main__":
    # Small, module-consistent shapes.
    isize, nz, nc, ngf = 8, 32, 4, 64
    batch = 2

    key = jax.random.PRNGKey(0)
    key, kz = jax.random.split(key)
    # Generator latent input in NCHW convention: (B, nz, 1, 1)
    z = jax.random.normal(kz, (batch, nz, 1, 1), dtype=jnp.float32)

    # f32 weights: tight-tolerance correctness check (single out tile path).
    params_f32 = init_mlp_g_params(key, nz, ngf, nc, isize, dtype=jnp.float32)
    out = jax.block_until_ready(mlp_g_forward(z, params_f32, nc, isize))
    ref = mlp_g_reference(z, params_f32, nc, isize)
    assert out.shape == (batch, nc, isize, isize), out.shape
    assert jnp.allclose(out, ref, atol=1e-4, rtol=1e-4), "f32 mismatch vs reference"

    # bf16 weights (recommended MXU path, esp. v5e), f32 accumulation; small
    # max_out_tile forces multiple output tiles -> exercises the core-split axis
    # and the bf16 hidden-activation cache.
    params_bf16 = [(w.astype(jnp.bfloat16), b.astype(jnp.bfloat16))
                   for (w, b) in params_f32]
    out_bf16 = jax.block_until_ready(
        mlp_g_forward(z, params_bf16, nc, isize, max_out_tile=128))
    ref_bf16 = mlp_g_reference(z, params_bf16, nc, isize)
    assert out_bf16.shape == (batch, nc, isize, isize), out_bf16.shape
    assert jnp.allclose(out_bf16, ref_bf16, atol=2e-2, rtol=2e-2), "bf16 mismatch vs reference"

    print("KERNEL_OK")
</pallas_src>

<mosaic_0001>
module attributes {stable_mosaic.version = 11 : i64} {
  func.func @mlp_g_kernel(%arg0: i32, %arg1: i32, %arg2: i32, %arg3: memref<16x32xf32, #tpu.memory_space<vmem>>, %arg4: memref<32x64xf32, #tpu.memory_space<vmem>>, %arg5: memref<1x64xf32, #tpu.memory_space<vmem>>, %arg6: memref<64x64xf32, #tpu.memory_space<vmem>>, %arg7: memref<1x64xf32, #tpu.memory_space<vmem>>, %arg8: memref<64x64xf32, #tpu.memory_space<vmem>>, %arg9: memref<1x64xf32, #tpu.memory_space<vmem>>, %arg10: memref<64x256xf32, #tpu.memory_space<vmem>>, %arg11: memref<1x256xf32, #tpu.memory_space<vmem>>, %arg12: memref<16x256xf32, #tpu.memory_space<vmem>>, %arg13: memref<16x64xf32, #tpu.memory_space<vmem>>) attributes {dimension_semantics = [#tpu.dimension_semantics<parallel>, #tpu.dimension_semantics<parallel>, #tpu.dimension_semantics<arbitrary>], iteration_bounds = array<i64: 1, 1, 1>, scalar_prefetch = 0 : i64, scratch_operands = 1 : i64, tpu.core_type = #tpu.core_type<tc>, window_params = [{transform_indices = @transform_0, window_bounds = array<i64: 16, 32>}, {pipeline_mode = #tpu.pipeline_mode<synchronous>, transform_indices = @transform_1, window_bounds = array<i64: 32, 64>}, {pipeline_mode = #tpu.pipeline_mode<synchronous>, transform_indices = @transform_2, window_bounds = array<i64: 1, 64>}, {pipeline_mode = #tpu.pipeline_mode<synchronous>, transform_indices = @transform_3, window_bounds = array<i64: 64, 64>}, {pipeline_mode = #tpu.pipeline_mode<synchronous>, transform_indices = @transform_4, window_bounds = array<i64: 1, 64>}, {pipeline_mode = #tpu.pipeline_mode<synchronous>, transform_indices = @transform_5, window_bounds = array<i64: 64, 64>}, {pipeline_mode = #tpu.pipeline_mode<synchronous>, transform_indices = @transform_6, window_bounds = array<i64: 1, 64>}, {transform_indices = @transform_7, window_bounds = array<i64: 64, 256>}, {transform_indices = @transform_8, window_bounds = array<i64: 1, 256>}, {transform_indices = @transform_9, window_bounds = array<i64: 16, 256>}]} {
    %c0_i32 = arith.constant 0 : i32
    %0 = arith.cmpi eq, %arg2, %c0_i32 : i32
    %1 = arith.extui %0 : i1 to i32
    %c0_i32_0 = arith.constant 0 : i32
    %2 = arith.cmpi ne, %1, %c0_i32_0 : i32
    scf.if %2 {
      %c0_8 = arith.constant 0 : index
      %c0_9 = arith.constant 0 : index
      %10 = vector.load %arg3[%c0_8, %c0_9] : memref<16x32xf32, #tpu.memory_space<vmem>>, vector<16x32xf32>
      %c0_10 = arith.constant 0 : index
      %c0_11 = arith.constant 0 : index
      %11 = vector.load %arg4[%c0_10, %c0_11] : memref<32x64xf32, #tpu.memory_space<vmem>>, vector<32x64xf32>
      %cst_12 = arith.constant dense<0.000000e+00> : vector<16x64xf32>
      %12 = tpu.matmul %10, %11, %cst_12 {dimension_numbers = #tpu.dot_dimension_numbers<[1], [0], [0], [1], [0, 0, 1, 1], [], []>} : vector<16x32xf32>, vector<32x64xf32>, vector<16x64xf32> -> vector<16x64xf32>
      %c0_13 = arith.constant 0 : index
      %c0_14 = arith.constant 0 : index
      %13 = vector.load %arg5[%c0_13, %c0_14] : memref<1x64xf32, #tpu.memory_space<vmem>>, vector<1x64xf32>
      %14 = vector.broadcast %13 : vector<1x64xf32> to vector<16x64xf32>
      %15 = arith.addf %12, %14 : vector<16x64xf32>
      %cst_15 = arith.constant 0.000000e+00 : f32
      %16 = vector.broadcast %cst_15 : f32 to vector<16x64xf32>
      %17 = arith.maximumf %15, %16 : vector<16x64xf32>
      %c0_16 = arith.constant 0 : index
      %c0_17 = arith.constant 0 : index
      %18 = vector.load %arg6[%c0_16, %c0_17] : memref<64x64xf32, #tpu.memory_space<vmem>>, vector<64x64xf32>
      %cst_18 = arith.constant dense<0.000000e+00> : vector<16x64xf32>
      %19 = tpu.matmul %17, %18, %cst_18 {dimension_numbers = #tpu.dot_dimension_numbers<[1], [0], [0], [1], [0, 0, 1, 1], [], []>} : vector<16x64xf32>, vector<64x64xf32>, vector<16x64xf32> -> vector<16x64xf32>
      %c0_19 = arith.constant 0 : index
      %c0_20 = arith.constant 0 : index
      %20 = vector.load %arg7[%c0_19, %c0_20] : memref<1x64xf32, #tpu.memory_space<vmem>>, vector<1x64xf32>
      %21 = vector.broadcast %20 : vector<1x64xf32> to vector<16x64xf32>
      %22 = arith.addf %19, %21 : vector<16x64xf32>
      %cst_21 = arith.constant 0.000000e+00 : f32
      %23 = vector.broadcast %cst_21 : f32 to vector<16x64xf32>
      %24 = arith.maximumf %22, %23 : vector<16x64xf32>
      %c0_22 = arith.constant 0 : index
      %c0_23 = arith.constant 0 : index
      %25 = vector.load %arg8[%c0_22, %c0_23] : memref<64x64xf32, #tpu.memory_space<vmem>>, vector<64x64xf32>
      %cst_24 = arith.constant dense<0.000000e+00> : vector<16x64xf32>
      %26 = tpu.matmul %24, %25, %cst_24 {dimension_numbers = #tpu.dot_dimension_numbers<[1], [0], [0], [1], [0, 0, 1, 1], [], []>} : vector<16x64xf32>, vector<64x64xf32>, vector<16x64xf32> -> vector<16x64xf32>
      %c0_25 = arith.constant 0 : index
      %c0_26 = arith.constant 0 : index
      %27 = vector.load %arg9[%c0_25, %c0_26] : memref<1x64xf32, #tpu.memory_space<vmem>>, vector<1x64xf32>
      %28 = vector.broadcast %27 : vector<1x64xf32> to vector<16x64xf32>
      %29 = arith.addf %26, %28 : vector<16x64xf32>
      %cst_27 = arith.constant 0.000000e+00 : f32
      %30 = vector.broadcast %cst_27 : f32 to vector<16x64xf32>
      %31 = arith.maximumf %29, %30 : vector<16x64xf32>
      %c0_28 = arith.constant 0 : index
      %c0_29 = arith.constant 0 : index
      %32 = vector.load %arg13[%c0_28, %c0_29] : memref<16x64xf32, #tpu.memory_space<vmem>>, vector<16x64xf32>
      tpu.vector_store %arg13[%c0_28, %c0_29], %31 {strides = array<i32>} : memref<16x64xf32, #tpu.memory_space<vmem>>, vector<16x64xf32>,
    } else {
    }
    %c0 = arith.constant 0 : index
    %c0_1 = arith.constant 0 : index
    %3 = vector.load %arg13[%c0, %c0_1] : memref<16x64xf32, #tpu.memory_space<vmem>>, vector<16x64xf32>
    %c0_2 = arith.constant 0 : index
    %c0_3 = arith.constant 0 : index
    %4 = vector.load %arg10[%c0_2, %c0_3] : memref<64x256xf32, #tpu.memory_space<vmem>>, vector<64x256xf32>
    %cst = arith.constant dense<0.000000e+00> : vector<16x256xf32>
    %5 = tpu.matmul %3, %4, %cst {dimension_numbers = #tpu.dot_dimension_numbers<[1], [0], [0], [1], [0, 0, 1, 1], [], []>} : vector<16x64xf32>, vector<64x256xf32>, vector<16x256xf32> -> vector<16x256xf32>
    %c0_4 = arith.constant 0 : index
    %c0_5 = arith.constant 0 : index
    %6 = vector.load %arg11[%c0_4, %c0_5] : memref<1x256xf32, #tpu.memory_space<vmem>>, vector<1x256xf32>
    %7 = vector.broadcast %6 : vector<1x256xf32> to vector<16x256xf32>
    %8 = arith.addf %5, %7 : vector<16x256xf32>
    %c0_6 = arith.constant 0 : index
    %c0_7 = arith.constant 0 : index
    %9 = vector.load %arg12[%c0_6, %c0_7] : memref<16x256xf32, #tpu.memory_space<vmem>>, vector<16x256xf32>
    tpu.vector_store %arg12[%c0_6, %c0_7], %8 {strides = array<i32>} : memref<16x256xf32, #tpu.memory_space<vmem>>, vector<16x256xf32>,
    return
  }
  func.func @transform_0(%arg0: i32, %arg1: i32, %arg2: i32) -> (i32, i32) {
    %c0_i32 = arith.constant 0 : i32
    %c0_i32_0 = arith.constant 0 : i32
    return %arg1, %c0_i32 : i32, i32
  }
  func.func @transform_1(%arg0: i32, %arg1: i32, %arg2: i32) -> (i32, i32) {
    %c0_i32 = arith.constant 0 : i32
    %c0_i32_0 = arith.constant 0 : i32
    %c0_i32_1 = arith.constant 0 : i32
    return %c0_i32, %c0_i32_0 : i32, i32
  }
  func.func @transform_2(%arg0: i32, %arg1: i32, %arg2: i32) -> (i32, i32) {
    %c0_i32 = arith.constant 0 : i32
    %c0_i32_0 = arith.constant 0 : i32
    %c0_i32_1 = arith.constant 0 : i32
    return %c0_i32, %c0_i32_0 : i32, i32
  }
  func.func @transform_3(%arg0: i32, %arg1: i32, %arg2: i32) -> (i32, i32) {
    %c0_i32 = arith.constant 0 : i32
    %c0_i32_0 = arith.constant 0 : i32
    %c0_i32_1 = arith.constant 0 : i32
    return %c0_i32, %c0_i32_0 : i32, i32
  }
  func.func @transform_4(%arg0: i32, %arg1: i32, %arg2: i32) -> (i32, i32) {
    %c0_i32 = arith.constant 0 : i32
    %c0_i32_0 = arith.constant 0 : i32
    %c0_i32_1 = arith.constant 0 : i32
    return %c0_i32, %c0_i32_0 : i32, i32
  }
  func.func @transform_5(%arg0: i32, %arg1: i32, %arg2: i32) -> (i32, i32) {
    %c0_i32 = arith.constant 0 : i32
    %c0_i32_0 = arith.constant 0 : i32
    %c0_i32_1 = arith.constant 0 : i32
    return %c0_i32, %c0_i32_0 : i32, i32
  }
  func.func @transform_6(%arg0: i32, %arg1: i32, %arg2: i32) -> (i32, i32) {
    %c0_i32 = arith.constant 0 : i32
    %c0_i32_0 = arith.constant 0 : i32
    %c0_i32_1 = arith.constant 0 : i32
    return %c0_i32, %c0_i32_0 : i32, i32
  }
  func.func @transform_7(%arg0: i32, %arg1: i32, %arg2: i32) -> (i32, i32) {
    %c1_i32 = arith.constant 1 : i32
    %0 = arith.muli %arg0, %c1_i32 : i32
    %1 = arith.addi %0, %arg2 : i32
    %c0_i32 = arith.constant 0 : i32
    %c0_i32_0 = arith.constant 0 : i32
    return %c0_i32, %1 : i32, i32
  }
  func.func @transform_8(%arg0: i32, %arg1: i32, %arg2: i32) -> (i32, i32) {
    %c1_i32 = arith.constant 1 : i32
    %0 = arith.muli %arg0, %c1_i32 : i32
    %1 = arith.addi %0, %arg2 : i32
    %c0_i32 = arith.constant 0 : i32
    %c0_i32_0 = arith.constant 0 : i32
    return %c0_i32, %1 : i32, i32
  }
  func.func @transform_9(%arg0: i32, %arg1: i32, %arg2: i32) -> (i32, i32) {
    %c1_i32 = arith.constant 1 : i32
    %0 = arith.muli %arg0, %c1_i32 : i32
    %1 = arith.addi %0, %arg2 : i32
    %c0_i32 = arith.constant 0 : i32
    return %arg1, %1 : i32, i32
  }
}

module attributes {stable_mosaic.version = 11 : i64} {
  func.func @mlp_g_kernel(%arg0: i32, %arg1: i32, %arg2: i32, %arg3: memref<16x32xf32, #tpu.memory_space<vmem>>, %arg4: memref<32x64xf32, #tpu.memory_space<vmem>>, %arg5: memref<1x64xf32, #tpu.memory_space<vmem>>, %arg6: memref<64x64xf32, #tpu.memory_space<vmem>>, %arg7: memref<1x64xf32, #tpu.memory_space<vmem>>, %arg8: memref<64x64xf32, #tpu.memory_space<vmem>>, %arg9: memref<1x64xf32, #tpu.memory_space<vmem>>, %arg10: memref<64x256xf32, #tpu.memory_space<vmem>>, %arg11: memref<1x256xf32, #tpu.memory_space<vmem>>, %arg12: memref<16x256xf32, #tpu.memory_space<vmem>>, %arg13: memref<16x64xf32, #tpu.memory_space<vmem>>) attributes {dimension_semantics = [#tpu.dimension_semantics<parallel>, #tpu.dimension_semantics<parallel>, #tpu.dimension_semantics<arbitrary>], iteration_bounds = array<i64: 1, 1, 1>, scalar_prefetch = 0 : i64, scratch_operands = 1 : i64, tpu.core_type = #tpu.core_type<tc>, window_params = [{transform_indices = @transform_0, window_bounds = array<i64: 16, 32>}, {pipeline_mode = #tpu.pipeline_mode<synchronous>, transform_indices = @transform_1, window_bounds = array<i64: 32, 64>}, {pipeline_mode = #tpu.pipeline_mode<synchronous>, transform_indices = @transform_2, window_bounds = array<i64: 1, 64>}, {pipeline_mode = #tpu.pipeline_mode<synchronous>, transform_indices = @transform_3, window_bounds = array<i64: 64, 64>}, {pipeline_mode = #tpu.pipeline_mode<synchronous>, transform_indices = @transform_4, window_bounds = array<i64: 1, 64>}, {pipeline_mode = #tpu.pipeline_mode<synchronous>, transform_indices = @transform_5, window_bounds = array<i64: 64, 64>}, {pipeline_mode = #tpu.pipeline_mode<synchronous>, transform_indices = @transform_6, window_bounds = array<i64: 1, 64>}, {transform_indices = @transform_7, window_bounds = array<i64: 64, 256>}, {transform_indices = @transform_8, window_bounds = array<i64: 1, 256>}, {transform_indices = @transform_9, window_bounds = array<i64: 16, 256>}]} {
    %c0_i32 = arith.constant 0 : i32
    %0 = arith.cmpi eq, %arg2, %c0_i32 : i32
    %1 = arith.extui %0 : i1 to i32
    %c0_i32_0 = arith.constant 0 : i32
    %2 = arith.cmpi ne, %1, %c0_i32_0 : i32
    scf.if %2 {
      %c0_8 = arith.constant 0 : index
      %c0_9 = arith.constant 0 : index
      %10 = vector.load %arg3[%c0_8, %c0_9] : memref<16x32xf32, #tpu.memory_space<vmem>>, vector<16x32xf32>
      %c0_10 = arith.constant 0 : index
      %c0_11 = arith.constant 0 : index
      %11 = vector.load %arg4[%c0_10, %c0_11] : memref<32x64xf32, #tpu.memory_space<vmem>>, vector<32x64xf32>
      %cst_12 = arith.constant dense<0.000000e+00> : vector<16x64xf32>
      %12 = tpu.matmul %10, %11, %cst_12 {dimension_numbers = #tpu.dot_dimension_numbers<[1], [0], [0], [1], [0, 0, 1, 1], [], []>} : vector<16x32xf32>, vector<32x64xf32>, vector<16x64xf32> -> vector<16x64xf32>
      %c0_13 = arith.constant 0 : index
      %c0_14 = arith.constant 0 : index
      %13 = vector.load %arg5[%c0_13, %c0_14] : memref<1x64xf32, #tpu.memory_space<vmem>>, vector<1x64xf32>
      %14 = vector.broadcast %13 : vector<1x64xf32> to vector<16x64xf32>
      %15 = arith.addf %12, %14 : vector<16x64xf32>
      %cst_15 = arith.constant 0.000000e+00 : f32
      %16 = vector.broadcast %cst_15 : f32 to vector<16x64xf32>
      %17 = arith.maximumf %15, %16 : vector<16x64xf32>
      %c0_16 = arith.constant 0 : index
      %c0_17 = arith.constant 0 : index
      %18 = vector.load %arg6[%c0_16, %c0_17] : memref<64x64xf32, #tpu.memory_space<vmem>>, vector<64x64xf32>
      %cst_18 = arith.constant dense<0.000000e+00> : vector<16x64xf32>
      %19 = tpu.matmul %17, %18, %cst_18 {dimension_numbers = #tpu.dot_dimension_numbers<[1], [0], [0], [1], [0, 0, 1, 1], [], []>} : vector<16x64xf32>, vector<64x64xf32>, vector<16x64xf32> -> vector<16x64xf32>
      %c0_19 = arith.constant 0 : index
      %c0_20 = arith.constant 0 : index
      %20 = vector.load %arg7[%c0_19, %c0_20] : memref<1x64xf32, #tpu.memory_space<vmem>>, vector<1x64xf32>
      %21 = vector.broadcast %20 : vector<1x64xf32> to vector<16x64xf32>
      %22 = arith.addf %19, %21 : vector<16x64xf32>
      %cst_21 = arith.constant 0.000000e+00 : f32
      %23 = vector.broadcast %cst_21 : f32 to vector<16x64xf32>
      %24 = arith.maximumf %22, %23 : vector<16x64xf32>
      %c0_22 = arith.constant 0 : index
      %c0_23 = arith.constant 0 : index
      %25 = vector.load %arg8[%c0_22, %c0_23] : memref<64x64xf32, #tpu.memory_space<vmem>>, vector<64x64xf32>
      %cst_24 = arith.constant dense<0.000000e+00> : vector<16x64xf32>
      %26 = tpu.matmul %24, %25, %cst_24 {dimension_numbers = #tpu.dot_dimension_numbers<[1], [0], [0], [1], [0, 0, 1, 1], [], []>} : vector<16x64xf32>, vector<64x64xf32>, vector<16x64xf32> -> vector<16x64xf32>
      %c0_25 = arith.constant 0 : index
      %c0_26 = arith.constant 0 : index
      %27 = vector.load %arg9[%c0_25, %c0_26] : memref<1x64xf32, #tpu.memory_space<vmem>>, vector<1x64xf32>
      %28 = vector.broadcast %27 : vector<1x64xf32> to vector<16x64xf32>
      %29 = arith.addf %26, %28 : vector<16x64xf32>
      %cst_27 = arith.constant 0.000000e+00 : f32
      %30 = vector.broadcast %cst_27 : f32 to vector<16x64xf32>
      %31 = arith.maximumf %29, %30 : vector<16x64xf32>
      %c0_28 = arith.constant 0 : index
      %c0_29 = arith.constant 0 : index
      %32 = vector.load %arg13[%c0_28, %c0_29] : memref<16x64xf32, #tpu.memory_space<vmem>>, vector<16x64xf32>
      tpu.vector_store %arg13[%c0_28, %c0_29], %31 {strides = array<i32>} : memref<16x64xf32, #tpu.memory_space<vmem>>, vector<16x64xf32>,
    } else {
    }
    %c0 = arith.constant 0 : index
    %c0_1 = arith.constant 0 : index
    %3 = vector.load %arg13[%c0, %c0_1] : memref<16x64xf32, #tpu.memory_space<vmem>>, vector<16x64xf32>
    %c0_2 = arith.constant 0 : index
    %c0_3 = arith.constant 0 : index
    %4 = vector.load %arg10[%c0_2, %c0_3] : memref<64x256xf32, #tpu.memory_space<vmem>>, vector<64x256xf32>
    %cst = arith.constant dense<0.000000e+00> : vector<16x256xf32>
    %5 = tpu.matmul %3, %4, %cst {dimension_numbers = #tpu.dot_dimension_numbers<[1], [0], [0], [1], [0, 0, 1, 1], [], []>} : vector<16x64xf32>, vector<64x256xf32>, vector<16x256xf32> -> vector<16x256xf32>
    %c0_4 = arith.constant 0 : index
    %c0_5 = arith.constant 0 : index
    %6 = vector.load %arg11[%c0_4, %c0_5] : memref<1x256xf32, #tpu.memory_space<vmem>>, vector<1x256xf32>
    %7 = vector.broadcast %6 : vector<1x256xf32> to vector<16x256xf32>
    %8 = arith.addf %5, %7 : vector<16x256xf32>
    %c0_6 = arith.constant 0 : index
    %c0_7 = arith.constant 0 : index
    %9 = vector.load %arg12[%c0_6, %c0_7] : memref<16x256xf32, #tpu.memory_space<vmem>>, vector<16x256xf32>
    tpu.vector_store %arg12[%c0_6, %c0_7], %8 {strides = array<i32>} : memref<16x256xf32, #tpu.memory_space<vmem>>, vector<16x256xf32>,
    return
  }
  func.func @transform_0(%arg0: i32, %arg1: i32, %arg2: i32) -> (i32, i32) {
    %c0_i32 = arith.constant 0 : i32
    %c0_i32_0 = arith.constant 0 : i32
    return %arg1, %c0_i32 : i32, i32
  }
  func.func @transform_1(%arg0: i32, %arg1: i32, %arg2: i32) -> (i32, i32) {
    %c0_i32 = arith.constant 0 : i32
    %c0_i32_0 = arith.constant 0 : i32
    %c0_i32_1 = arith.constant 0 : i32
    return %c0_i32, %c0_i32_0 : i32, i32
  }
  func.func @transform_2(%arg0: i32, %arg1: i32, %arg2: i32) -> (i32, i32) {
    %c0_i32 = arith.constant 0 : i32
    %c0_i32_0 = arith.constant 0 : i32
    %c0_i32_1 = arith.constant 0 : i32
    return %c0_i32, %c0_i32_0 : i32, i32
  }
  func.func @transform_3(%arg0: i32, %arg1: i32, %arg2: i32) -> (i32, i32) {
    %c0_i32 = arith.constant 0 : i32
    %c0_i32_0 = arith.constant 0 : i32
    %c0_i32_1 = arith.constant 0 : i32
    return %c0_i32, %c0_i32_0 : i32, i32
  }
  func.func @transform_4(%arg0: i32, %arg1: i32, %arg2: i32) -> (i32, i32) {
    %c0_i32 = arith.constant 0 : i32
    %c0_i32_0 = arith.constant 0 : i32
    %c0_i32_1 = arith.constant 0 : i32
    return %c0_i32, %c0_i32_0 : i32, i32
  }
  func.func @transform_5(%arg0: i32, %arg1: i32, %arg2: i32) -> (i32, i32) {
    %c0_i32 = arith.constant 0 : i32
    %c0_i32_0 = arith.constant 0 : i32
    %c0_i32_1 = arith.constant 0 : i32
    return %c0_i32, %c0_i32_0 : i32, i32
  }
  func.func @transform_6(%arg0: i32, %arg1: i32, %arg2: i32) -> (i32, i32) {
    %c0_i32 = arith.constant 0 : i32
    %c0_i32_0 = arith.constant 0 : i32
    %c0_i32_1 = arith.constant 0 : i32
    return %c0_i32, %c0_i32_0 : i32, i32
  }
  func.func @transform_7(%arg0: i32, %arg1: i32, %arg2: i32) -> (i32, i32) {
    %c1_i32 = arith.constant 1 : i32
    %0 = arith.muli %arg0, %c1_i32 : i32
    %1 = arith.addi %0, %arg2 : i32
    %c0_i32 = arith.constant 0 : i32
    %c0_i32_0 = arith.constant 0 : i32
    return %c0_i32, %1 : i32, i32
  }
  func.func @transform_8(%arg0: i32, %arg1: i32, %arg2: i32) -> (i32, i32) {
    %c1_i32 = arith.constant 1 : i32
    %0 = arith.muli %arg0, %c1_i32 : i32
    %1 = arith.addi %0, %arg2 : i32
    %c0_i32 = arith.constant 0 : i32
    %c0_i32_0 = arith.constant 0 : i32
    return %c0_i32, %1 : i32, i32
  }
  func.func @transform_9(%arg0: i32, %arg1: i32, %arg2: i32) -> (i32, i32) {
    %c1_i32 = arith.constant 1 : i32
    %0 = arith.muli %arg0, %c1_i32 : i32
    %1 = arith.addi %0, %arg2 : i32
    %c0_i32 = arith.constant 0 : i32
    return %arg1, %1 : i32, i32
  }
}

</mosaic_0001>

<llo_original>
// kernel: tpu_custom_call.1
$region0: #{tpu_custom_call.1}
  #allocation0 [shape = 'u32[]', space=smem, size = 0x4, offset = 0x4, fixed_abs, tag = 'smem constant byte address 0x4 - core index']
  #allocation1 [shape = 'u32[144,128]{1,0:T(1,128)}', space=vmem, size = 0x12000, scoped, tag = 'internal scratch']
  #allocation2 [shape = 'f32[16,64]{1,0:T(8,128)}', space=vmem, size = 0x2000, scoped, tag = 'scratch operand']
  %s0 = inlined_call_operand.hbm [shape: f32[16,32], index: 0, kind: input, shape index: {}]
  %s1 = inlined_call_operand.hbm [shape: f32[32,64], index: 1, kind: input, shape index: {}]
  %s2 = inlined_call_operand.vmem [shape: f32[1,64], index: 2, kind: input, shape index: {}]
  %s3 = inlined_call_operand.hbm [shape: f32[64,64], index: 3, kind: input, shape index: {}]
  %s4 = inlined_call_operand.vmem [shape: f32[1,64], index: 4, kind: input, shape index: {}]
  %s5 = inlined_call_operand.hbm [shape: f32[64,64], index: 5, kind: input, shape index: {}]
  %s6 = inlined_call_operand.vmem [shape: f32[1,64], index: 6, kind: input, shape index: {}]
  %s7 = inlined_call_operand.hbm [shape: f32[64,256], index: 7, kind: input, shape index: {}]
  %s8 = inlined_call_operand.vmem [shape: f32[1,256], index: 8, kind: input, shape index: {}]
  %s9 = inlined_call_operand.hbm [shape: f32[16,256], index: 9, kind: output, shape index: {}]
  %s10 = sld [smem:[#allocation0]]
  $region70: #{tpu_custom_call.1} parent=0
    _
  %s12 = ssub.s32 1, %s10
  %s13 = scalar_select 0, %s12, %s10
  $region1: #{tpu_custom_call.1} parent=0
    #allocation3 [shape = 'u8[8192]{0}', space=vmem, size = 0x2000, scoped, tag = 'input window, operand 0, single buffered']
    #allocation4 [shape = 's32[1]{0}', space=sflag, size = 0x4, scoped, tag = 'scoped memory for tpu_custom_call.1']
    #allocation5 [shape = 's32[1]{0}', space=sflag, size = 0x4, scoped, tag = 'scoped memory for tpu_custom_call.1']
    #allocation6 [shape = 'u8[16384]{0}', space=vmem, size = 0x4000, scoped, tag = 'input window, operand 1, single buffered']
    #allocation7 [shape = 's32[1]{0}', space=sflag, size = 0x4, scoped, tag = 'scoped memory for tpu_custom_call.1']
    #allocation8 [shape = 'u8[32768]{0}', space=vmem, size = 0x8000, scoped, tag = 'input window, operand 3, single buffered']
    #allocation9 [shape = 'u8[32768]{0}', space=vmem, size = 0x8000, scoped, tag = 'input window, operand 5, single buffered']
    #allocation10 [shape = 's32[1]{0}', space=sflag, size = 0x4, scoped, tag = 'scoped memory for tpu_custom_call.1']
    #allocation11 [shape = 'u8[65536]{0}', space=vmem, size = 0x10000, scoped, tag = 'input window, operand 7, single buffered']
    #allocation12 [shape = 'u8[16384]{0}', space=vmem, size = 0x4000, scoped, tag = 'output window, operand 0, single buffered']
    %14 = vsyncpa [#allocation4], 0
    %15 = vsyncpa [#allocation7], 0
    %16 = vsyncpa [#allocation10], 0
    %17 = vsyncpa [#allocation5], 0
    // Predicated region
    $region2: #{tpu_custom_call.1} parent=1 // pred_check
      _
    $region3: #{tpu_custom_call.1} parent=1 // pred_check_branch
      %19 = sbr.rel (0) target = $region5
    $region4: #{tpu_custom_call.1} parent=1 // pred_region
      %s21 = ssub.s32 256, 256
      %22 = vsyncadd [#allocation4], %s21
      %s23 = sshll.u32 [#allocation3], 4
      %s24 = int_to_ptr.vmem [resolvable:$true] %s23
      %29 = dma.hbm_to_vmem [thread:$0]  %s0, 256, %s24, [#allocation4], 128, 128, 8
    $region5: #{tpu_custom_call.1} parent=1 // pred_fallthru
      _
    // Predicated region
    $region6: #{tpu_custom_call.1} parent=1 // pred_check
      _
    $region7: #{tpu_custom_call.1} parent=1 // pred_check_branch
      %31 = sbr.rel (0) target = $region9
    $region8: #{tpu_custom_call.1} parent=1 // pred_region
      %s33 = ssub.s32 512, 512
      %34 = vsyncadd [#allocation7], %s33
      %s35 = sshll.u32 [#allocation6], 4
      %s36 = int_to_ptr.vmem [resolvable:$true] %s35
      %41 = dma.hbm_to_vmem [thread:$0]  %s1, 512, %s36, [#allocation7], 128, 128, 8
    $region9: #{tpu_custom_call.1} parent=1 // pred_fallthru
      _
    // Predicated region
    $region10: #{tpu_custom_call.1} parent=1 // pred_check
      _
    $region11: #{tpu_custom_call.1} parent=1 // pred_check_branch
      %43 = sbr.rel (0) target = $region13
    $region12: #{tpu_custom_call.1} parent=1 // pred_region
      _
    $region13: #{tpu_custom_call.1} parent=1 // pred_fallthru
      _
    // Predicated region
    $region14: #{tpu_custom_call.1} parent=1 // pred_check
      _
    $region15: #{tpu_custom_call.1} parent=1 // pred_check_branch
      %45 = sbr.rel (0) target = $region17
    $region16: #{tpu_custom_call.1} parent=1 // pred_region
      %s47 = ssub.s32 1024, 1024
      %48 = vsyncadd [#allocation7], %s47
      %s49 = sshll.u32 [#allocation8], 4
      %s50 = int_to_ptr.vmem [resolvable:$true] %s49
      %55 = dma.hbm_to_vmem [thread:$0]  %s3, 1024, %s50, [#allocation7], 128, 128, 8
    $region17: #{tpu_custom_call.1} parent=1 // pred_fallthru
      _
    // Predicated region
    $region18: #{tpu_custom_call.1} parent=1 // pred_check
      _
    $region19: #{tpu_custom_call.1} parent=1 // pred_check_branch
      %57 = sbr.rel (0) target = $region21
    $region20: #{tpu_custom_call.1} parent=1 // pred_region
      _
    $region21: #{tpu_custom_call.1} parent=1 // pred_fallthru
      _
    // Predicated region
    $region22: #{tpu_custom_call.1} parent=1 // pred_check
      _
    $region23: #{tpu_custom_call.1} parent=1 // pred_check_branch
      %59 = sbr.rel (0) target = $region25
    $region24: #{tpu_custom_call.1} parent=1 // pred_region
      %s61 = ssub.s32 1024, 1024
      %62 = vsyncadd [#allocation10], %s61
      %s63 = sshll.u32 [#allocation9], 4
      %s64 = int_to_ptr.vmem [resolvable:$true] %s63
      %69 = dma.hbm_to_vmem [thread:$0]  %s5, 1024, %s64, [#allocation10], 128, 128, 8
    $region25: #{tpu_custom_call.1} parent=1 // pred_fallthru
      _
    // Predicated region
    $region26: #{tpu_custom_call.1} parent=1 // pred_check
      _
    $region27: #{tpu_custom_call.1} parent=1 // pred_check_branch
      %71 = sbr.rel (0) target = $region29
    $region28: #{tpu_custom_call.1} parent=1 // pred_region
      _
    $region29: #{tpu_custom_call.1} parent=1 // pred_fallthru
      _
    // Predicated region
    $region30: #{tpu_custom_call.1} parent=1 // pred_check
      _
    $region31: #{tpu_custom_call.1} parent=1 // pred_check_branch
      %73 = sbr.rel (0) target = $region33
    $region32: #{tpu_custom_call.1} parent=1 // pred_region
      %s74 = sadd.s32 0, 0
      %s75 = smul.u32 2, %s74
      %s77 = ssub.s32 2048, 2048
      %78 = vsyncadd [#allocation10], %s77
      %s79 = smul.addr %s75, 128
      %s80 = scalar_lea.hbm %s7, %s79
      %s81 = sshll.u32 [#allocation11], 4
      %s82 = int_to_ptr.vmem [resolvable:$true] %s81
      %87 = dma.hbm_to_vmem [thread:$0]  %s80, 2048, %s82, [#allocation10], 256, 256, 16
    $region33: #{tpu_custom_call.1} parent=1 // pred_fallthru
      _
    // Predicated region
    $region34: #{tpu_custom_call.1} parent=1 // pred_check
      _
    $region35: #{tpu_custom_call.1} parent=1 // pred_check_branch
      %89 = sbr.rel (0) target = $region37
    $region36: #{tpu_custom_call.1} parent=1 // pred_region
      %s90 = sadd.s32 0, 0
      %s91 = smul.u32 2, %s90
      %p92 = scmp.lt.s32.totalorder %s91, 1
      %s93 = scalar_select %p92, %s91, 1
      %s94 = scalar_lea.vmem %s8, %s93
      %s95 = sadd.s32 0, 0
      %s96 = smul.u32 2, %s95
    $region37: #{tpu_custom_call.1} parent=1 // pred_fallthru
      _
    // Predicated region
    $region38: #{tpu_custom_call.1} parent=1 // pred_check
      _
    $region39: #{tpu_custom_call.1} parent=1 // pred_check_branch
      %98 = sbr.rel (0) target = $region41
    $region40: #{tpu_custom_call.1} parent=1 // pred_region
      %99 = dma.done [#allocation4], 256
    $region41: #{tpu_custom_call.1} parent=1 // pred_fallthru
      _
    // Predicated region
    $region42: #{tpu_custom_call.1} parent=1 // pred_check
      _
    $region43: #{tpu_custom_call.1} parent=1 // pred_check_branch
      %101 = sbr.rel (0) target = $region45
    $region44: #{tpu_custom_call.1} parent=1 // pred_region
      %102 = dma.done [#allocation7], 512
    $region45: #{tpu_custom_call.1} parent=1 // pred_fallthru
      _
    // Predicated region
    $region46: #{tpu_custom_call.1} parent=1 // pred_check
      _
    $region47: #{tpu_custom_call.1} parent=1 // pred_check_branch
      %104 = sbr.rel (0) target = $region49
    $region48: #{tpu_custom_call.1} parent=1 // pred_region
      %105 = dma.done [#allocation7], 1024
    $region49: #{tpu_custom_call.1} parent=1 // pred_fallthru
      _
    // Predicated region
    $region50: #{tpu_custom_call.1} parent=1 // pred_check
      _
    $region51: #{tpu_custom_call.1} parent=1 // pred_check_branch
      %107 = sbr.rel (0) target = $region53
    $region52: #{tpu_custom_call.1} parent=1 // pred_region
      %108 = dma.done [#allocation10], 1024
    $region53: #{tpu_custom_call.1} parent=1 // pred_fallthru
      _
    // Predicated region
    $region54: #{tpu_custom_call.1} parent=1 // pred_check
      _
    $region55: #{tpu_custom_call.1} parent=1 // pred_check_branch
      %110 = sbr.rel (0) target = $region57
    $region56: #{tpu_custom_call.1} parent=1 // pred_region
      %111 = dma.done [#allocation10], 2048
    $region57: #{tpu_custom_call.1} parent=1 // pred_fallthru
      _
    %s112 = sadd.s32 0, 0
    %s113 = smul.u32 2, %s112
    %p114 = scmp.lt.s32.totalorder %s113, 1
    %s115 = scalar_select %p114, %s113, 1
    %s116 = scalar_lea.vmem %s8, %s115
    %s117 = sadd.s32 0, 0
    %s118 = smul.u32 2, %s117
    %s119 = sadd.s32 0, 0
    %s120 = smul.u32 2, %s119
    %p121 = scmp.lt.s32.totalorder %s120, 1
    %s122 = scalar_select %p121, %s120, 1
    %s123 = scalar_lea.vmem %s8, %s122
    %s124 = sadd.s32 0, 0
    %s125 = smul.u32 2, %s124
    %s126 = sadd.s32 0, 0
    %s127 = smul.u32 2, %s126
    %p128 = scmp.eq.s32.totalorder 0, 0
    // Predicated region
    $region58: #{tpu_custom_call.1} parent=1 // pred_check
      %p129 = pneg %p128
    $region59: #{tpu_custom_call.1} parent=1 // pred_check_branch
      %131 = sbr.rel (%p129) target = $region61
    $region60: #{tpu_custom_call.1} parent=1 // pred_region
      %v132 = vld [vmem:[#allocation3] sm:$0xff]
      %v133 = vld [vmem:[#allocation3 + $0x8] sm:$0xff]
      %v134 = vld [vmem:[#allocation6] sm:$0xff]
      %v135 = vld [vmem:[#allocation6 + $0x8] sm:$0xff]
      %v136 = vld [vmem:[#allocation6 + $0x10] sm:$0xff]
      %v137 = vld [vmem:[#allocation6 + $0x18] sm:$0xff]
      %v138 = vld [vmem:[%s2] sm:$0x1]
      %v140 = vlaneseq
      %v141 = vshrl.u32 %v140, 7
      %v142 = vsub.s32 0, %v141
      %v143 = vrot.slane %v138, %v142
      %vm145 = vcmask 261120
      %v147 = vsel %vm145, %v132, 0
      %v150 = vsel %vm145, %v133, 0
      %152 = vmatprep.subr.mxu0 0.0
      %153 = vmatpush1.msra.mxu0 0.0
      %154 = vmatprep.subr.mxu0 0.0
      %155 = vmatpush1.msra.mxu0 0.0
      %156 = vmatprep.subr.mxu0 0.0
      %157 = vmatpush1.msra.mxu0 0.0
      %158 = vmatprep.subr.mxu0 0.0
      %159 = vmatpush1.msra.mxu0 0.0
      %160 = vmatprep.subr.mxu0 0.0
      %161 = vmatpush1.msra.mxu0 0.0
      %162 = vmatprep.subr.mxu0 0.0
      %163 = vmatpush1.msra.mxu0 0.0
      %164 = vmatprep.subr.mxu0 0.0
      %165 = vmatpush1.msra.mxu0 0.0
      %166 = vmatprep.subr.mxu0 0.0
      %167 = vmatpush1.msra.mxu0 0.0
      %168 = vmatprep.subr.mxu0 0.0
      %169 = vmatpush1.msra.mxu0 0.0
      %170 = vmatprep.subr.mxu0 0.0
      %171 = vmatpush1.msra.mxu0 0.0
      %172 = vmatprep.subr.mxu0 0.0
      %173 = vmatpush1.msra.mxu0 0.0
      %174 = vmatprep.subr.mxu0 0.0
      %175 = vmatpush1.msra.mxu0 0.0
      %176 = vmatprep.subr.mxu0 0.0
      %177 = vmatpush1.msra.mxu0 %v137
      %178 = vmatprep.subr.mxu0 0.0
      %179 = vmatpush1.msra.mxu0 %v136
      %180 = vmatprep.subr.mxu0 0.0
      %181 = vmatpush1.msra.mxu0 %v135
      %182 = vmatprep.subr.mxu0 0.0
      %183 = vmatpush1.msra.mxu0 %v134
      %184 = vmatprep.subr.mxu0 0.0
      %185 = vmatpush2.msra.mxu0 0.0
      %186 = vmatprep.subr.mxu0 0.0
      %187 = vmatpush2.msra.mxu0 0.0
      %188 = vmatprep.subr.mxu0 0.0
      %189 = vmatpush2.msra.mxu0 0.0
      %190 = vmatprep.subr.mxu0 0.0
      %191 = vmatpush2.msra.mxu0 0.0
      %192 = vmatprep.subr.mxu0 0.0
      %193 = vmatpush2.msra.mxu0 0.0
      %194 = vmatprep.subr.mxu0 0.0
      %195 = vmatpush2.msra.mxu0 0.0
      %196 = vmatprep.subr.mxu0 0.0
      %197 = vmatpush2.msra.mxu0 0.0
      %198 = vmatprep.subr.mxu0 0.0
      %199 = vmatpush2.msra.mxu0 0.0
      %200 = vmatprep.subr.mxu0 0.0
      %201 = vmatpush2.msra.mxu0 0.0
      %202 = vmatprep.subr.mxu0 0.0
      %203 = vmatpush2.msra.mxu0 0.0
      %204 = vmatprep.subr.mxu0 0.0
      %205 = vmatpush2.msra.mxu0 0.0
      %206 = vmatprep.subr.mxu0 0.0
      %207 = vmatpush2.msra.mxu0 0.0
      %208 = vmatprep.subr.mxu0 0.0
      %209 = vmatpush2.msra.mxu0 0.0
      %210 = vmatprep.subr.mxu0 0.0
      %211 = vmatpush2.msra.mxu0 0.0
      %212 = vmatprep.subr.mxu0 0.0
      %213 = vmatpush2.msra.mxu0 0.0
      %214 = vmatprep.subr.mxu0 0.0
      %215 = vmatpush2.msra.mxu0 0.0
      %216 = vmatprep.mubr.f32.mxu0 0.0
      %217 = vmatmul.mubr.f32.gmra.mxu0 %v147
      %v218 = vpop.f32.mrf.mxu0
      %v219 = vadd.f32 %v143, %v218
      %v220 = vpop.f32.mrf.mxu0
      %221 = vmatprep.mubr.f32.mxu0 0.0
      %222 = vmatmul.mubr.f32.gmra.mxu0 %v150
      %v223 = vpop.f32.mrf.mxu0
      %v224 = vadd.f32 %v143, %v223
      %v225 = vpop.f32.mrf.mxu0
      %226 = vdwg.mxu0
      %v227 = vmax.f32 %v219, 0.0
      %v228 = vmax.f32 %v224, 0.0
      %v229 = vld [vmem:[#allocation8] sm:$0xff]
      %v230 = vld [vmem:[#allocation8 + $0x8] sm:$0xff]
      %v231 = vld [vmem:[#allocation8 + $0x10] sm:$0xff]
      %v232 = vld [vmem:[#allocation8 + $0x18] sm:$0xff]
      %v233 = vld [vmem:[#allocation8 + $0x20] sm:$0xff]
      %v234 = vld [vmem:[#allocation8 + $0x28] sm:$0xff]
      %v235 = vld [vmem:[#allocation8 + $0x30] sm:$0xff]
      %v236 = vld [vmem:[#allocation8 + $0x38] sm:$0xff]
      %v237 = vld [vmem:[%s4] sm:$0x1]
      %v239 = vlaneseq
      %v240 = vshrl.u32 %v239, 7
      %v241 = vsub.s32 0, %v240
      %v242 = vrot.slane %v237, %v241
      %vm244 = vcmask 523264
      %v246 = vsel %vm244, %v227, 0
      %v249 = vsel %vm244, %v228, 0
      %251 = vmatprep.subr.mxu0 0.0
      %252 = vmatpush1.msra.mxu0 0.0
      %253 = vmatprep.subr.mxu0 0.0
      %254 = vmatpush1.msra.mxu0 0.0
      %255 = vmatprep.subr.mxu0 0.0
      %256 = vmatpush1.msra.mxu0 0.0
      %257 = vmatprep.subr.mxu0 0.0
      %258 = vmatpush1.msra.mxu0 0.0
      %259 = vmatprep.subr.mxu0 0.0
      %260 = vmatpush1.msra.mxu0 0.0
      %261 = vmatprep.subr.mxu0 0.0
      %262 = vmatpush1.msra.mxu0 0.0
      %263 = vmatprep.subr.mxu0 0.0
      %264 = vmatpush1.msra.mxu0 0.0
      %265 = vmatprep.subr.mxu0 0.0
      %266 = vmatpush1.msra.mxu0 0.0
      %267 = vmatprep.subr.mxu0 0.0
      %268 = vmatpush1.msra.mxu0 %v236
      %269 = vmatprep.subr.mxu0 0.0
      %270 = vmatpush1.msra.mxu0 %v235
      %271 = vmatprep.subr.mxu0 0.0
      %272 = vmatpush1.msra.mxu0 %v234
      %273 = vmatprep.subr.mxu0 0.0
      %274 = vmatpush1.msra.mxu0 %v233
      %275 = vmatprep.subr.mxu0 0.0
      %276 = vmatpush1.msra.mxu0 %v232
      %277 = vmatprep.subr.mxu0 0.0
      %278 = vmatpush1.msra.mxu0 %v231
      %279 = vmatprep.subr.mxu0 0.0
      %280 = vmatpush1.msra.mxu0 %v230
      %281 = vmatprep.subr.mxu0 0.0
      %282 = vmatpush1.msra.mxu0 %v229
      %283 = vmatprep.subr.mxu0 0.0
      %284 = vmatpush2.msra.mxu0 0.0
      %285 = vmatprep.subr.mxu0 0.0
      %286 = vmatpush2.msra.mxu0 0.0
      %287 = vmatprep.subr.mxu0 0.0
      %288 = vmatpush2.msra.mxu0 0.0
      %289 = vmatprep.subr.mxu0 0.0
      %290 = vmatpush2.msra.mxu0 0.0
      %291 = vmatprep.subr.mxu0 0.0
      %292 = vmatpush2.msra.mxu0 0.0
      %293 = vmatprep.subr.mxu0 0.0
      %294 = vmatpush2.msra.mxu0 0.0
      %295 = vmatprep.subr.mxu0 0.0
      %296 = vmatpush2.msra.mxu0 0.0
      %297 = vmatprep.subr.mxu0 0.0
      %298 = vmatpush2.msra.mxu0 0.0
      %299 = vmatprep.subr.mxu0 0.0
      %300 = vmatpush2.msra.mxu0 0.0
      %301 = vmatprep.subr.mxu0 0.0
      %302 = vmatpush2.msra.mxu0 0.0
      %303 = vmatprep.subr.mxu0 0.0
      %304 = vmatpush2.msra.mxu0 0.0
      %305 = vmatprep.subr.mxu0 0.0
      %306 = vmatpush2.msra.mxu0 0.0
      %307 = vmatprep.subr.mxu0 0.0
      %308 = vmatpush2.msra.mxu0 0.0
      %309 = vmatprep.subr.mxu0 0.0
      %310 = vmatpush2.msra.mxu0 0.0
      %311 = vmatprep.subr.mxu0 0.0
      %312 = vmatpush2.msra.mxu0 0.0
      %313 = vmatprep.subr.mxu0 0.0
      %314 = vmatpush2.msra.mxu0 0.0
      %315 = vmatprep.mubr.f32.mxu0 0.0
      %316 = vmatmul.mubr.f32.gmra.mxu0 %v246
      %v317 = vpop.f32.mrf.mxu0
      %v318 = vadd.f32 %v242, %v317
      %v319 = vpop.f32.mrf.mxu0
      %320 = vmatprep.mubr.f32.mxu0 0.0
      %321 = vmatmul.mubr.f32.gmra.mxu0 %v249
      %v322 = vpop.f32.mrf.mxu0
      %v323 = vadd.f32 %v242, %v322
      %v324 = vpop.f32.mrf.mxu0
      %325 = vdwg.mxu0
      %v326 = vmax.f32 %v318, 0.0
      %v327 = vmax.f32 %v323, 0.0
      %v328 = vld [vmem:[#allocation9] sm:$0xff]
      %v329 = vld [vmem:[#allocation9 + $0x8] sm:$0xff]
      %v330 = vld [vmem:[#allocation9 + $0x10] sm:$0xff]
      %v331 = vld [vmem:[#allocation9 + $0x18] sm:$0xff]
      %v332 = vld [vmem:[#allocation9 + $0x20] sm:$0xff]
      %v333 = vld [vmem:[#allocation9 + $0x28] sm:$0xff]
      %v334 = vld [vmem:[#allocation9 + $0x30] sm:$0xff]
      %v335 = vld [vmem:[#allocation9 + $0x38] sm:$0xff]
      %v336 = vld [vmem:[%s6] sm:$0x1]
      %v338 = vlaneseq
      %v339 = vshrl.u32 %v338, 7
      %v340 = vsub.s32 0, %v339
      %v341 = vrot.slane %v336, %v340
      %v344 = vsel %vm244, %v326, 0
      %v347 = vsel %vm244, %v327, 0
      %349 = vmatprep.subr.mxu0 0.0
      %350 = vmatpush1.msra.mxu0 0.0
      %351 = vmatprep.subr.mxu0 0.0
      %352 = vmatpush1.msra.mxu0 0.0
      %353 = vmatprep.subr.mxu0 0.0
      %354 = vmatpush1.msra.mxu0 0.0
      %355 = vmatprep.subr.mxu0 0.0
      %356 = vmatpush1.msra.mxu0 0.0
      %357 = vmatprep.subr.mxu0 0.0
      %358 = vmatpush1.msra.mxu0 0.0
      %359 = vmatprep.subr.mxu0 0.0
      %360 = vmatpush1.msra.mxu0 0.0
      %361 = vmatprep.subr.mxu0 0.0
      %362 = vmatpush1.msra.mxu0 0.0
      %363 = vmatprep.subr.mxu0 0.0
      %364 = vmatpush1.msra.mxu0 0.0
      %365 = vmatprep.subr.mxu0 0.0
      %366 = vmatpush1.msra.mxu0 %v335
      %367 = vmatprep.subr.mxu0 0.0
      %368 = vmatpush1.msra.mxu0 %v334
      %369 = vmatprep.subr.mxu0 0.0
      %370 = vmatpush1.msra.mxu0 %v333
      %371 = vmatprep.subr.mxu0 0.0
      %372 = vmatpush1.msra.mxu0 %v332
      %373 = vmatprep.subr.mxu0 0.0
      %374 = vmatpush1.msra.mxu0 %v331
      %375 = vmatprep.subr.mxu0 0.0
      %376 = vmatpush1.msra.mxu0 %v330
      %377 = vmatprep.subr.mxu0 0.0
      %378 = vmatpush1.msra.mxu0 %v329
      %379 = vmatprep.subr.mxu0 0.0
      %380 = vmatpush1.msra.mxu0 %v328
      %381 = vmatprep.subr.mxu0 0.0
      %382 = vmatpush2.msra.mxu0 0.0
      %383 = vmatprep.subr.mxu0 0.0
      %384 = vmatpush2.msra.mxu0 0.0
      %385 = vmatprep.subr.mxu0 0.0
      %386 = vmatpush2.msra.mxu0 0.0
      %387 = vmatprep.subr.mxu0 0.0
      %388 = vmatpush2.msra.mxu0 0.0
      %389 = vmatprep.subr.mxu0 0.0
      %390 = vmatpush2.msra.mxu0 0.0
      %391 = vmatprep.subr.mxu0 0.0
      %392 = vmatpush2.msra.mxu0 0.0
      %393 = vmatprep.subr.mxu0 0.0
      %394 = vmatpush2.msra.mxu0 0.0
      %395 = vmatprep.subr.mxu0 0.0
      %396 = vmatpush2.msra.mxu0 0.0
      %397 = vmatprep.subr.mxu0 0.0
      %398 = vmatpush2.msra.mxu0 0.0
      %399 = vmatprep.subr.mxu0 0.0
      %400 = vmatpush2.msra.mxu0 0.0
      %401 = vmatprep.subr.mxu0 0.0
      %402 = vmatpush2.msra.mxu0 0.0
      %403 = vmatprep.subr.mxu0 0.0
      %404 = vmatpush2.msra.mxu0 0.0
      %405 = vmatprep.subr.mxu0 0.0
      %406 = vmatpush2.msra.mxu0 0.0
      %407 = vmatprep.subr.mxu0 0.0
      %408 = vmatpush2.msra.mxu0 0.0
      %409 = vmatprep.subr.mxu0 0.0
      %410 = vmatpush2.msra.mxu0 0.0
      %411 = vmatprep.subr.mxu0 0.0
      %412 = vmatpush2.msra.mxu0 0.0
      %413 = vmatprep.mubr.f32.mxu0 0.0
      %414 = vmatmul.mubr.f32.gmra.mxu0 %v344
      %v415 = vpop.f32.mrf.mxu0
      %v416 = vadd.f32 %v341, %v415
      %v417 = vpop.f32.mrf.mxu0
      %418 = vmatprep.mubr.f32.mxu0 0.0
      %419 = vmatmul.mubr.f32.gmra.mxu0 %v347
      %v420 = vpop.f32.mrf.mxu0
      %v421 = vadd.f32 %v341, %v420
      %v422 = vpop.f32.mrf.mxu0
      %423 = vdwg.mxu0
      %v424 = vmax.f32 %v416, 0.0
      %v425 = vmax.f32 %v421, 0.0
      %426 = vst.msk [vmem:[#allocation2] sm:$0xff] %vm244, %v424
      %427 = vst.msk [vmem:[#allocation2 + $0x8] sm:$0xff] %vm244, %v425
    $region61: #{tpu_custom_call.1} parent=1 // pred_fallthru
      _
    %v428 = vld [vmem:[#allocation2] sm:$0xff]
    %v429 = vld [vmem:[#allocation2 + $0x8] sm:$0xff]
    %v430 = vld [vmem:[#allocation11] sm:$0xff]
    %v431 = vld [vmem:[#allocation11 + $0x8] sm:$0xff]
    %v432 = vld [vmem:[#allocation11 + $0x10] sm:$0xff]
    %v433 = vld [vmem:[#allocation11 + $0x18] sm:$0xff]
    %v434 = vld [vmem:[#allocation11 + $0x20] sm:$0xff]
    %v435 = vld [vmem:[#allocation11 + $0x28] sm:$0xff]
    %v436 = vld [vmem:[#allocation11 + $0x30] sm:$0xff]
    %v437 = vld [vmem:[#allocation11 + $0x38] sm:$0xff]
    %v438 = vld [vmem:[#allocation11 + $0x40] sm:$0xff]
    %v439 = vld [vmem:[#allocation11 + $0x48] sm:$0xff]
    %v440 = vld [vmem:[#allocation11 + $0x50] sm:$0xff]
    %v441 = vld [vmem:[#allocation11 + $0x58] sm:$0xff]
    %v442 = vld [vmem:[#allocation11 + $0x60] sm:$0xff]
    %v443 = vld [vmem:[#allocation11 + $0x68] sm:$0xff]
    %v444 = vld [vmem:[#allocation11 + $0x70] sm:$0xff]
    %v445 = vld [vmem:[#allocation11 + $0x78] sm:$0xff]
    %v446 = vld [vmem:[%s123] sm:$0x3]
    %v448 = vlaneseq
    %v449 = vshrl.u32 %v448, 7
    %v450 = vsub.s32 0, %v449
    %v451 = vrot.slane %v446, %v450
    %v452 = vlaneseq
    %v453 = vshrl.u32 %v452, 7
    %v454 = vsub.s32 1, %v453
    %v455 = vrot.slane %v446, %v454
    %vm458 = vcmask 523264
    %v460 = vsel %vm458, %v428, 0
    %v463 = vsel %vm458, %v429, 0
    %465 = vmatprep.subr.mxu0 0.0
    %466 = vmatpush1.msra.mxu0 0.0
    %467 = vmatprep.subr.mxu0 0.0
    %468 = vmatpush1.msra.mxu0 0.0
    %469 = vmatprep.subr.mxu0 0.0
    %470 = vmatpush1.msra.mxu0 0.0
    %471 = vmatprep.subr.mxu0 0.0
    %472 = vmatpush1.msra.mxu0 0.0
    %473 = vmatprep.subr.mxu0 0.0
    %474 = vmatpush1.msra.mxu0 0.0
    %475 = vmatprep.subr.mxu0 0.0
    %476 = vmatpush1.msra.mxu0 0.0
    %477 = vmatprep.subr.mxu0 0.0
    %478 = vmatpush1.msra.mxu0 0.0
    %479 = vmatprep.subr.mxu0 0.0
    %480 = vmatpush1.msra.mxu0 0.0
    %481 = vmatprep.subr.mxu0 %v445
    %482 = vmatpush1.msra.mxu0 %v444
    %483 = vmatprep.subr.mxu0 %v443
    %484 = vmatpush1.msra.mxu0 %v442
    %485 = vmatprep.subr.mxu0 %v441
    %486 = vmatpush1.msra.mxu0 %v440
    %487 = vmatprep.subr.mxu0 %v439
    %488 = vmatpush1.msra.mxu0 %v438
    %489 = vmatprep.subr.mxu0 %v437
    %490 = vmatpush1.msra.mxu0 %v436
    %491 = vmatprep.subr.mxu0 %v435
    %492 = vmatpush1.msra.mxu0 %v434
    %493 = vmatprep.subr.mxu0 %v433
    %494 = vmatpush1.msra.mxu0 %v432
    %495 = vmatprep.subr.mxu0 %v431
    %496 = vmatpush1.msra.mxu0 %v430
    %497 = vmatprep.subr.mxu0 0.0
    %498 = vmatpush2.msra.mxu0 0.0
    %499 = vmatprep.subr.mxu0 0.0
    %500 = vmatpush2.msra.mxu0 0.0
    %501 = vmatprep.subr.mxu0 0.0
    %502 = vmatpush2.msra.mxu0 0.0
    %503 = vmatprep.subr.mxu0 0.0
    %504 = vmatpush2.msra.mxu0 0.0
    %505 = vmatprep.subr.mxu0 0.0
    %506 = vmatpush2.msra.mxu0 0.0
    %507 = vmatprep.subr.mxu0 0.0
    %508 = vmatpush2.msra.mxu0 0.0
    %509 = vmatprep.subr.mxu0 0.0
    %510 = vmatpush2.msra.mxu0 0.0
    %511 = vmatprep.subr.mxu0 0.0
    %512 = vmatpush2.msra.mxu0 0.0
    %513 = vmatprep.subr.mxu0 0.0
    %514 = vmatpush2.msra.mxu0 0.0
    %515 = vmatprep.subr.mxu0 0.0
    %516 = vmatpush2.msra.mxu0 0.0
    %517 = vmatprep.subr.mxu0 0.0
    %518 = vmatpush2.msra.mxu0 0.0
    %519 = vmatprep.subr.mxu0 0.0
    %520 = vmatpush2.msra.mxu0 0.0
    %521 = vmatprep.subr.mxu0 0.0
    %522 = vmatpush2.msra.mxu0 0.0
    %523 = vmatprep.subr.mxu0 0.0
    %524 = vmatpush2.msra.mxu0 0.0
    %525 = vmatprep.subr.mxu0 0.0
    %526 = vmatpush2.msra.mxu0 0.0
    %527 = vmatprep.subr.mxu0 0.0
    %528 = vmatpush2.msra.mxu0 0.0
    %529 = vmatprep.mubr.f32.mxu0 0.0
    %530 = vmatmul.mubr.f32.gmra.mxu0 %v460
    %v531 = vpop.f32.mrf.mxu0
    %v532 = vadd.f32 %v451, %v531
    %v533 = vpop.f32.mrf.mxu0
    %v534 = vadd.f32 %v455, %v533
    %535 = vmatprep.mubr.f32.mxu0 0.0
    %536 = vmatmul.mubr.f32.gmra.mxu0 %v463
    %v537 = vpop.f32.mrf.mxu0
    %v538 = vadd.f32 %v451, %v537
    %v539 = vpop.f32.mrf.mxu0
    %v540 = vadd.f32 %v455, %v539
    %541 = vdwg.mxu0
    %542 = vst [vmem:[#allocation12] sm:$0xff] %v532
    %543 = vst [vmem:[#allocation12 + $0x8] sm:$0xff] %v534
    %544 = vst [vmem:[#allocation12 + $0x10] sm:$0xff] %v538
    %545 = vst [vmem:[#allocation12 + $0x18] sm:$0xff] %v540
    // Predicated region
    $region62: #{tpu_custom_call.1} parent=1 // pred_check
      _
    $region63: #{tpu_custom_call.1} parent=1 // pred_check_branch
      %547 = sbr.rel (0) target = $region65
    $region64: #{tpu_custom_call.1} parent=1 // pred_region
      %s548 = sadd.s32 0, 0
      %s549 = smul.u32 2, %s548
      %s551 = ssub.s32 512, 512
      %552 = vsyncadd [#allocation5], %s551
      %s553 = smul.addr %s549, 128
      %s554 = scalar_lea.hbm %s9, %s553
      %s555 = sshll.u32 [#allocation12], 4
      %s556 = int_to_ptr.vmem [resolvable:$true] %s555
      %561 = dma.vmem_to_hbm [thread:$0]  %s556, 512, %s554, [#allocation5], 256, 256, 16
    $region65: #{tpu_custom_call.1} parent=1 // pred_fallthru
      _
    // Predicated region
    $region66: #{tpu_custom_call.1} parent=1 // pred_check
      _
    $region67: #{tpu_custom_call.1} parent=1 // pred_check_branch
      %563 = sbr.rel (0) target = $region69
    $region68: #{tpu_custom_call.1} parent=1 // pred_region
      %564 = dma.done [#allocation5], 512
    $region69: #{tpu_custom_call.1} parent=1 // pred_fallthru
      _
    %565 = vsyncpa [#allocation4], 1
    %566 = vsyncpa [#allocation7], 1
    %567 = vsyncpa [#allocation10], 1
    %568 = vsyncpa [#allocation5], 1

// kernel: tpu_custom_call.1
$region0: #{tpu_custom_call.1}
  #allocation0 [shape = 'u32[]', space=smem, size = 0x4, offset = 0x4, fixed_abs, tag = 'smem constant byte address 0x4 - core index']
  #allocation1 [shape = 'u32[144,128]{1,0:T(1,128)}', space=vmem, size = 0x12000, scoped, tag = 'internal scratch']
  #allocation2 [shape = 'f32[16,64]{1,0:T(8,128)}', space=vmem, size = 0x2000, scoped, tag = 'scratch operand']
  %s0 = inlined_call_operand.hbm [shape: f32[16,32], index: 0, kind: input, shape index: {}]
  %s1 = inlined_call_operand.hbm [shape: f32[32,64], index: 1, kind: input, shape index: {}]
  %s2 = inlined_call_operand.vmem [shape: f32[1,64], index: 2, kind: input, shape index: {}]
  %s3 = inlined_call_operand.hbm [shape: f32[64,64], index: 3, kind: input, shape index: {}]
  %s4 = inlined_call_operand.vmem [shape: f32[1,64], index: 4, kind: input, shape index: {}]
  %s5 = inlined_call_operand.hbm [shape: f32[64,64], index: 5, kind: input, shape index: {}]
  %s6 = inlined_call_operand.vmem [shape: f32[1,64], index: 6, kind: input, shape index: {}]
  %s7 = inlined_call_operand.hbm [shape: f32[64,256], index: 7, kind: input, shape index: {}]
  %s8 = inlined_call_operand.vmem [shape: f32[1,256], index: 8, kind: input, shape index: {}]
  %s9 = inlined_call_operand.hbm [shape: f32[16,256], index: 9, kind: output, shape index: {}]
  %s10 = sld [smem:[#allocation0]]
  $region70: #{tpu_custom_call.1} parent=0
    _
  %s12 = ssub.s32 1, %s10
  %s13 = scalar_select 0, %s12, %s10
  $region1: #{tpu_custom_call.1} parent=0
    #allocation3 [shape = 'u8[8192]{0}', space=vmem, size = 0x2000, scoped, tag = 'input window, operand 0, single buffered']
    #allocation4 [shape = 's32[1]{0}', space=sflag, size = 0x4, scoped, tag = 'scoped memory for tpu_custom_call.1']
    #allocation5 [shape = 's32[1]{0}', space=sflag, size = 0x4, scoped, tag = 'scoped memory for tpu_custom_call.1']
    #allocation6 [shape = 'u8[16384]{0}', space=vmem, size = 0x4000, scoped, tag = 'input window, operand 1, single buffered']
    #allocation7 [shape = 's32[1]{0}', space=sflag, size = 0x4, scoped, tag = 'scoped memory for tpu_custom_call.1']
    #allocation8 [shape = 'u8[32768]{0}', space=vmem, size = 0x8000, scoped, tag = 'input window, operand 3, single buffered']
    #allocation9 [shape = 'u8[32768]{0}', space=vmem, size = 0x8000, scoped, tag = 'input window, operand 5, single buffered']
    #allocation10 [shape = 's32[1]{0}', space=sflag, size = 0x4, scoped, tag = 'scoped memory for tpu_custom_call.1']
    #allocation11 [shape = 'u8[65536]{0}', space=vmem, size = 0x10000, scoped, tag = 'input window, operand 7, single buffered']
    #allocation12 [shape = 'u8[16384]{0}', space=vmem, size = 0x4000, scoped, tag = 'output window, operand 0, single buffered']
    %14 = vsyncpa [#allocation4], 0
    %15 = vsyncpa [#allocation7], 0
    %16 = vsyncpa [#allocation10], 0
    %17 = vsyncpa [#allocation5], 0
    // Predicated region
    $region2: #{tpu_custom_call.1} parent=1 // pred_check
      _
    $region3: #{tpu_custom_call.1} parent=1 // pred_check_branch
      %19 = sbr.rel (0) target = $region5
    $region4: #{tpu_custom_call.1} parent=1 // pred_region
      %s21 = ssub.s32 256, 256
      %22 = vsyncadd [#allocation4], %s21
      %s23 = sshll.u32 [#allocation3], 4
      %s24 = int_to_ptr.vmem [resolvable:$true] %s23
      %29 = dma.hbm_to_vmem [thread:$0]  %s0, 256, %s24, [#allocation4], 128, 128, 8
    $region5: #{tpu_custom_call.1} parent=1 // pred_fallthru
      _
    // Predicated region
    $region6: #{tpu_custom_call.1} parent=1 // pred_check
      _
    $region7: #{tpu_custom_call.1} parent=1 // pred_check_branch
      %31 = sbr.rel (0) target = $region9
    $region8: #{tpu_custom_call.1} parent=1 // pred_region
      %s33 = ssub.s32 512, 512
      %34 = vsyncadd [#allocation7], %s33
      %s35 = sshll.u32 [#allocation6], 4
      %s36 = int_to_ptr.vmem [resolvable:$true] %s35
      %41 = dma.hbm_to_vmem [thread:$0]  %s1, 512, %s36, [#allocation7], 128, 128, 8
    $region9: #{tpu_custom_call.1} parent=1 // pred_fallthru
      _
    // Predicated region
    $region10: #{tpu_custom_call.1} parent=1 // pred_check
      _
    $region11: #{tpu_custom_call.1} parent=1 // pred_check_branch
      %43 = sbr.rel (0) target = $region13
    $region12: #{tpu_custom_call.1} parent=1 // pred_region
      _
    $region13: #{tpu_custom_call.1} parent=1 // pred_fallthru
      _
    // Predicated region
    $region14: #{tpu_custom_call.1} parent=1 // pred_check
      _
    $region15: #{tpu_custom_call.1} parent=1 // pred_check_branch
      %45 = sbr.rel (0) target = $region17
    $region16: #{tpu_custom_call.1} parent=1 // pred_region
      %s47 = ssub.s32 1024, 1024
      %48 = vsyncadd [#allocation7], %s47
      %s49 = sshll.u32 [#allocation8], 4
      %s50 = int_to_ptr.vmem [resolvable:$true] %s49
      %55 = dma.hbm_to_vmem [thread:$0]  %s3, 1024, %s50, [#allocation7], 128, 128, 8
    $region17: #{tpu_custom_call.1} parent=1 // pred_fallthru
      _
    // Predicated region
    $region18: #{tpu_custom_call.1} parent=1 // pred_check
      _
    $region19: #{tpu_custom_call.1} parent=1 // pred_check_branch
      %57 = sbr.rel (0) target = $region21
    $region20: #{tpu_custom_call.1} parent=1 // pred_region
      _
    $region21: #{tpu_custom_call.1} parent=1 // pred_fallthru
      _
    // Predicated region
    $region22: #{tpu_custom_call.1} parent=1 // pred_check
      _
    $region23: #{tpu_custom_call.1} parent=1 // pred_check_branch
      %59 = sbr.rel (0) target = $region25
    $region24: #{tpu_custom_call.1} parent=1 // pred_region
      %s61 = ssub.s32 1024, 1024
      %62 = vsyncadd [#allocation10], %s61
      %s63 = sshll.u32 [#allocation9], 4
      %s64 = int_to_ptr.vmem [resolvable:$true] %s63
      %69 = dma.hbm_to_vmem [thread:$0]  %s5, 1024, %s64, [#allocation10], 128, 128, 8
    $region25: #{tpu_custom_call.1} parent=1 // pred_fallthru
      _
    // Predicated region
    $region26: #{tpu_custom_call.1} parent=1 // pred_check
      _
    $region27: #{tpu_custom_call.1} parent=1 // pred_check_branch
      %71 = sbr.rel (0) target = $region29
    $region28: #{tpu_custom_call.1} parent=1 // pred_region
      _
    $region29: #{tpu_custom_call.1} parent=1 // pred_fallthru
      _
    // Predicated region
    $region30: #{tpu_custom_call.1} parent=1 // pred_check
      _
    $region31: #{tpu_custom_call.1} parent=1 // pred_check_branch
      %73 = sbr.rel (0) target = $region33
    $region32: #{tpu_custom_call.1} parent=1 // pred_region
      %s74 = sadd.s32 0, 0
      %s75 = smul.u32 2, %s74
      %s77 = ssub.s32 2048, 2048
      %78 = vsyncadd [#allocation10], %s77
      %s79 = smul.addr %s75, 128
      %s80 = scalar_lea.hbm %s7, %s79
      %s81 = sshll.u32 [#allocation11], 4
      %s82 = int_to_ptr.vmem [resolvable:$true] %s81
      %87 = dma.hbm_to_vmem [thread:$0]  %s80, 2048, %s82, [#allocation10], 256, 256, 16
    $region33: #{tpu_custom_call.1} parent=1 // pred_fallthru
      _
    // Predicated region
    $region34: #{tpu_custom_call.1} parent=1 // pred_check
      _
    $region35: #{tpu_custom_call.1} parent=1 // pred_check_branch
      %89 = sbr.rel (0) target = $region37
    $region36: #{tpu_custom_call.1} parent=1 // pred_region
      %s90 = sadd.s32 0, 0
      %s91 = smul.u32 2, %s90
      %p92 = scmp.lt.s32.totalorder %s91, 1
      %s93 = scalar_select %p92, %s91, 1
      %s94 = scalar_lea.vmem %s8, %s93
      %s95 = sadd.s32 0, 0
      %s96 = smul.u32 2, %s95
    $region37: #{tpu_custom_call.1} parent=1 // pred_fallthru
      _
    // Predicated region
    $region38: #{tpu_custom_call.1} parent=1 // pred_check
      _
    $region39: #{tpu_custom_call.1} parent=1 // pred_check_branch
      %98 = sbr.rel (0) target = $region41
    $region40: #{tpu_custom_call.1} parent=1 // pred_region
      %99 = dma.done [#allocation4], 256
    $region41: #{tpu_custom_call.1} parent=1 // pred_fallthru
      _
    // Predicated region
    $region42: #{tpu_custom_call.1} parent=1 // pred_check
      _
    $region43: #{tpu_custom_call.1} parent=1 // pred_check_branch
      %101 = sbr.rel (0) target = $region45
    $region44: #{tpu_custom_call.1} parent=1 // pred_region
      %102 = dma.done [#allocation7], 512
    $region45: #{tpu_custom_call.1} parent=1 // pred_fallthru
      _
    // Predicated region
    $region46: #{tpu_custom_call.1} parent=1 // pred_check
      _
    $region47: #{tpu_custom_call.1} parent=1 // pred_check_branch
      %104 = sbr.rel (0) target = $region49
    $region48: #{tpu_custom_call.1} parent=1 // pred_region
      %105 = dma.done [#allocation7], 1024
    $region49: #{tpu_custom_call.1} parent=1 // pred_fallthru
      _
    // Predicated region
    $region50: #{tpu_custom_call.1} parent=1 // pred_check
      _
    $region51: #{tpu_custom_call.1} parent=1 // pred_check_branch
      %107 = sbr.rel (0) target = $region53
    $region52: #{tpu_custom_call.1} parent=1 // pred_region
      %108 = dma.done [#allocation10], 1024
    $region53: #{tpu_custom_call.1} parent=1 // pred_fallthru
      _
    // Predicated region
    $region54: #{tpu_custom_call.1} parent=1 // pred_check
      _
    $region55: #{tpu_custom_call.1} parent=1 // pred_check_branch
      %110 = sbr.rel (0) target = $region57
    $region56: #{tpu_custom_call.1} parent=1 // pred_region
      %111 = dma.done [#allocation10], 2048
    $region57: #{tpu_custom_call.1} parent=1 // pred_fallthru
      _
    %s112 = sadd.s32 0, 0
    %s113 = smul.u32 2, %s112
    %p114 = scmp.lt.s32.totalorder %s113, 1
    %s115 = scalar_select %p114, %s113, 1
    %s116 = scalar_lea.vmem %s8, %s115
    %s117 = sadd.s32 0, 0
    %s118 = smul.u32 2, %s117
    %s119 = sadd.s32 0, 0
    %s120 = smul.u32 2, %s119
    %p121 = scmp.lt.s32.totalorder %s120, 1
    %s122 = scalar_select %p121, %s120, 1
    %s123 = scalar_lea.vmem %s8, %s122
    %s124 = sadd.s32 0, 0
    %s125 = smul.u32 2, %s124
    %s126 = sadd.s32 0, 0
    %s127 = smul.u32 2, %s126
    %p128 = scmp.eq.s32.totalorder 0, 0
    // Predicated region
    $region58: #{tpu_custom_call.1} parent=1 // pred_check
      %p129 = pneg %p128
    $region59: #{tpu_custom_call.1} parent=1 // pred_check_branch
      %131 = sbr.rel (%p129) target = $region61
    $region60: #{tpu_custom_call.1} parent=1 // pred_region
      %v132 = vld [vmem:[#allocation3] sm:$0xff]
      %v133 = vld [vmem:[#allocation3 + $0x8] sm:$0xff]
      %v134 = vld [vmem:[#allocation6] sm:$0xff]
      %v135 = vld [vmem:[#allocation6 + $0x8] sm:$0xff]
      %v136 = vld [vmem:[#allocation6 + $0x10] sm:$0xff]
      %v137 = vld [vmem:[#allocation6 + $0x18] sm:$0xff]
      %v138 = vld [vmem:[%s2] sm:$0x1]
      %v140 = vlaneseq
      %v141 = vshrl.u32 %v140, 7
      %v142 = vsub.s32 0, %v141
      %v143 = vrot.slane %v138, %v142
      %vm145 = vcmask 261120
      %v147 = vsel %vm145, %v132, 0
      %v150 = vsel %vm145, %v133, 0
      %152 = vmatprep.subr.mxu0 0.0
      %153 = vmatpush1.msra.mxu0 0.0
      %154 = vmatprep.subr.mxu0 0.0
      %155 = vmatpush1.msra.mxu0 0.0
      %156 = vmatprep.subr.mxu0 0.0
      %157 = vmatpush1.msra.mxu0 0.0
      %158 = vmatprep.subr.mxu0 0.0
      %159 = vmatpush1.msra.mxu0 0.0
      %160 = vmatprep.subr.mxu0 0.0
      %161 = vmatpush1.msra.mxu0 0.0
      %162 = vmatprep.subr.mxu0 0.0
      %163 = vmatpush1.msra.mxu0 0.0
      %164 = vmatprep.subr.mxu0 0.0
      %165 = vmatpush1.msra.mxu0 0.0
      %166 = vmatprep.subr.mxu0 0.0
      %167 = vmatpush1.msra.mxu0 0.0
      %168 = vmatprep.subr.mxu0 0.0
      %169 = vmatpush1.msra.mxu0 0.0
      %170 = vmatprep.subr.mxu0 0.0
      %171 = vmatpush1.msra.mxu0 0.0
      %172 = vmatprep.subr.mxu0 0.0
      %173 = vmatpush1.msra.mxu0 0.0
      %174 = vmatprep.subr.mxu0 0.0
      %175 = vmatpush1.msra.mxu0 0.0
      %176 = vmatprep.subr.mxu0 0.0
      %177 = vmatpush1.msra.mxu0 %v137
      %178 = vmatprep.subr.mxu0 0.0
      %179 = vmatpush1.msra.mxu0 %v136
      %180 = vmatprep.subr.mxu0 0.0
      %181 = vmatpush1.msra.mxu0 %v135
      %182 = vmatprep.subr.mxu0 0.0
      %183 = vmatpush1.msra.mxu0 %v134
      %184 = vmatprep.subr.mxu0 0.0
      %185 = vmatpush2.msra.mxu0 0.0
      %186 = vmatprep.subr.mxu0 0.0
      %187 = vmatpush2.msra.mxu0 0.0
      %188 = vmatprep.subr.mxu0 0.0
      %189 = vmatpush2.msra.mxu0 0.0
      %190 = vmatprep.subr.mxu0 0.0
      %191 = vmatpush2.msra.mxu0 0.0
      %192 = vmatprep.subr.mxu0 0.0
      %193 = vmatpush2.msra.mxu0 0.0
      %194 = vmatprep.subr.mxu0 0.0
      %195 = vmatpush2.msra.mxu0 0.0
      %196 = vmatprep.subr.mxu0 0.0
      %197 = vmatpush2.msra.mxu0 0.0
      %198 = vmatprep.subr.mxu0 0.0
      %199 = vmatpush2.msra.mxu0 0.0
      %200 = vmatprep.subr.mxu0 0.0
      %201 = vmatpush2.msra.mxu0 0.0
      %202 = vmatprep.subr.mxu0 0.0
      %203 = vmatpush2.msra.mxu0 0.0
      %204 = vmatprep.subr.mxu0 0.0
      %205 = vmatpush2.msra.mxu0 0.0
      %206 = vmatprep.subr.mxu0 0.0
      %207 = vmatpush2.msra.mxu0 0.0
      %208 = vmatprep.subr.mxu0 0.0
      %209 = vmatpush2.msra.mxu0 0.0
      %210 = vmatprep.subr.mxu0 0.0
      %211 = vmatpush2.msra.mxu0 0.0
      %212 = vmatprep.subr.mxu0 0.0
      %213 = vmatpush2.msra.mxu0 0.0
      %214 = vmatprep.subr.mxu0 0.0
      %215 = vmatpush2.msra.mxu0 0.0
      %216 = vmatprep.mubr.f32.mxu0 0.0
      %217 = vmatmul.mubr.f32.gmra.mxu0 %v147
      %v218 = vpop.f32.mrf.mxu0
      %v219 = vadd.f32 %v143, %v218
      %v220 = vpop.f32.mrf.mxu0
      %221 = vmatprep.mubr.f32.mxu0 0.0
      %222 = vmatmul.mubr.f32.gmra.mxu0 %v150
      %v223 = vpop.f32.mrf.mxu0
      %v224 = vadd.f32 %v143, %v223
      %v225 = vpop.f32.mrf.mxu0
      %226 = vdwg.mxu0
      %v227 = vmax.f32 %v219, 0.0
      %v228 = vmax.f32 %v224, 0.0
      %v229 = vld [vmem:[#allocation8] sm:$0xff]
      %v230 = vld [vmem:[#allocation8 + $0x8] sm:$0xff]
      %v231 = vld [vmem:[#allocation8 + $0x10] sm:$0xff]
      %v232 = vld [vmem:[#allocation8 + $0x18] sm:$0xff]
      %v233 = vld [vmem:[#allocation8 + $0x20] sm:$0xff]
      %v234 = vld [vmem:[#allocation8 + $0x28] sm:$0xff]
      %v235 = vld [vmem:[#allocation8 + $0x30] sm:$0xff]
      %v236 = vld [vmem:[#allocation8 + $0x38] sm:$0xff]
      %v237 = vld [vmem:[%s4] sm:$0x1]
      %v239 = vlaneseq
      %v240 = vshrl.u32 %v239, 7
      %v241 = vsub.s32 0, %v240
      %v242 = vrot.slane %v237, %v241
      %vm244 = vcmask 523264
      %v246 = vsel %vm244, %v227, 0
      %v249 = vsel %vm244, %v228, 0
      %251 = vmatprep.subr.mxu0 0.0
      %252 = vmatpush1.msra.mxu0 0.0
      %253 = vmatprep.subr.mxu0 0.0
      %254 = vmatpush1.msra.mxu0 0.0
      %255 = vmatprep.subr.mxu0 0.0
      %256 = vmatpush1.msra.mxu0 0.0
      %257 = vmatprep.subr.mxu0 0.0
      %258 = vmatpush1.msra.mxu0 0.0
      %259 = vmatprep.subr.mxu0 0.0
      %260 = vmatpush1.msra.mxu0 0.0
      %261 = vmatprep.subr.mxu0 0.0
      %262 = vmatpush1.msra.mxu0 0.0
      %263 = vmatprep.subr.mxu0 0.0
      %264 = vmatpush1.msra.mxu0 0.0
      %265 = vmatprep.subr.mxu0 0.0
      %266 = vmatpush1.msra.mxu0 0.0
      %267 = vmatprep.subr.mxu0 0.0
      %268 = vmatpush1.msra.mxu0 %v236
      %269 = vmatprep.subr.mxu0 0.0
      %270 = vmatpush1.msra.mxu0 %v235
      %271 = vmatprep.subr.mxu0 0.0
      %272 = vmatpush1.msra.mxu0 %v234
      %273 = vmatprep.subr.mxu0 0.0
      %274 = vmatpush1.msra.mxu0 %v233
      %275 = vmatprep.subr.mxu0 0.0
      %276 = vmatpush1.msra.mxu0 %v232
      %277 = vmatprep.subr.mxu0 0.0
      %278 = vmatpush1.msra.mxu0 %v231
      %279 = vmatprep.subr.mxu0 0.0
      %280 = vmatpush1.msra.mxu0 %v230
      %281 = vmatprep.subr.mxu0 0.0
      %282 = vmatpush1.msra.mxu0 %v229
      %283 = vmatprep.subr.mxu0 0.0
      %284 = vmatpush2.msra.mxu0 0.0
      %285 = vmatprep.subr.mxu0 0.0
      %286 = vmatpush2.msra.mxu0 0.0
      %287 = vmatprep.subr.mxu0 0.0
      %288 = vmatpush2.msra.mxu0 0.0
      %289 = vmatprep.subr.mxu0 0.0
      %290 = vmatpush2.msra.mxu0 0.0
      %291 = vmatprep.subr.mxu0 0.0
      %292 = vmatpush2.msra.mxu0 0.0
      %293 = vmatprep.subr.mxu0 0.0
      %294 = vmatpush2.msra.mxu0 0.0
      %295 = vmatprep.subr.mxu0 0.0
      %296 = vmatpush2.msra.mxu0 0.0
      %297 = vmatprep.subr.mxu0 0.0
      %298 = vmatpush2.msra.mxu0 0.0
      %299 = vmatprep.subr.mxu0 0.0
      %300 = vmatpush2.msra.mxu0 0.0
      %301 = vmatprep.subr.mxu0 0.0
      %302 = vmatpush2.msra.mxu0 0.0
      %303 = vmatprep.subr.mxu0 0.0
      %304 = vmatpush2.msra.mxu0 0.0
      %305 = vmatprep.subr.mxu0 0.0
      %306 = vmatpush2.msra.mxu0 0.0
      %307 = vmatprep.subr.mxu0 0.0
      %308 = vmatpush2.msra.mxu0 0.0
      %309 = vmatprep.subr.mxu0 0.0
      %310 = vmatpush2.msra.mxu0 0.0
      %311 = vmatprep.subr.mxu0 0.0
      %312 = vmatpush2.msra.mxu0 0.0
      %313 = vmatprep.subr.mxu0 0.0
      %314 = vmatpush2.msra.mxu0 0.0
      %315 = vmatprep.mubr.f32.mxu0 0.0
      %316 = vmatmul.mubr.f32.gmra.mxu0 %v246
      %v317 = vpop.f32.mrf.mxu0
      %v318 = vadd.f32 %v242, %v317
      %v319 = vpop.f32.mrf.mxu0
      %320 = vmatprep.mubr.f32.mxu0 0.0
      %321 = vmatmul.mubr.f32.gmra.mxu0 %v249
      %v322 = vpop.f32.mrf.mxu0
      %v323 = vadd.f32 %v242, %v322
      %v324 = vpop.f32.mrf.mxu0
      %325 = vdwg.mxu0
      %v326 = vmax.f32 %v318, 0.0
      %v327 = vmax.f32 %v323, 0.0
      %v328 = vld [vmem:[#allocation9] sm:$0xff]
      %v329 = vld [vmem:[#allocation9 + $0x8] sm:$0xff]
      %v330 = vld [vmem:[#allocation9 + $0x10] sm:$0xff]
      %v331 = vld [vmem:[#allocation9 + $0x18] sm:$0xff]
      %v332 = vld [vmem:[#allocation9 + $0x20] sm:$0xff]
      %v333 = vld [vmem:[#allocation9 + $0x28] sm:$0xff]
      %v334 = vld [vmem:[#allocation9 + $0x30] sm:$0xff]
      %v335 = vld [vmem:[#allocation9 + $0x38] sm:$0xff]
      %v336 = vld [vmem:[%s6] sm:$0x1]
      %v338 = vlaneseq
      %v339 = vshrl.u32 %v338, 7
      %v340 = vsub.s32 0, %v339
      %v341 = vrot.slane %v336, %v340
      %v344 = vsel %vm244, %v326, 0
      %v347 = vsel %vm244, %v327, 0
      %349 = vmatprep.subr.mxu0 0.0
      %350 = vmatpush1.msra.mxu0 0.0
      %351 = vmatprep.subr.mxu0 0.0
      %352 = vmatpush1.msra.mxu0 0.0
      %353 = vmatprep.subr.mxu0 0.0
      %354 = vmatpush1.msra.mxu0 0.0
      %355 = vmatprep.subr.mxu0 0.0
      %356 = vmatpush1.msra.mxu0 0.0
      %357 = vmatprep.subr.mxu0 0.0
      %358 = vmatpush1.msra.mxu0 0.0
      %359 = vmatprep.subr.mxu0 0.0
      %360 = vmatpush1.msra.mxu0 0.0
      %361 = vmatprep.subr.mxu0 0.0
      %362 = vmatpush1.msra.mxu0 0.0
      %363 = vmatprep.subr.mxu0 0.0
      %364 = vmatpush1.msra.mxu0 0.0
      %365 = vmatprep.subr.mxu0 0.0
      %366 = vmatpush1.msra.mxu0 %v335
      %367 = vmatprep.subr.mxu0 0.0
      %368 = vmatpush1.msra.mxu0 %v334
      %369 = vmatprep.subr.mxu0 0.0
      %370 = vmatpush1.msra.mxu0 %v333
      %371 = vmatprep.subr.mxu0 0.0
      %372 = vmatpush1.msra.mxu0 %v332
      %373 = vmatprep.subr.mxu0 0.0
      %374 = vmatpush1.msra.mxu0 %v331
      %375 = vmatprep.subr.mxu0 0.0
      %376 = vmatpush1.msra.mxu0 %v330
      %377 = vmatprep.subr.mxu0 0.0
      %378 = vmatpush1.msra.mxu0 %v329
      %379 = vmatprep.subr.mxu0 0.0
      %380 = vmatpush1.msra.mxu0 %v328
      %381 = vmatprep.subr.mxu0 0.0
      %382 = vmatpush2.msra.mxu0 0.0
      %383 = vmatprep.subr.mxu0 0.0
      %384 = vmatpush2.msra.mxu0 0.0
      %385 = vmatprep.subr.mxu0 0.0
      %386 = vmatpush2.msra.mxu0 0.0
      %387 = vmatprep.subr.mxu0 0.0
      %388 = vmatpush2.msra.mxu0 0.0
      %389 = vmatprep.subr.mxu0 0.0
      %390 = vmatpush2.msra.mxu0 0.0
      %391 = vmatprep.subr.mxu0 0.0
      %392 = vmatpush2.msra.mxu0 0.0
      %393 = vmatprep.subr.mxu0 0.0
      %394 = vmatpush2.msra.mxu0 0.0
      %395 = vmatprep.subr.mxu0 0.0
      %396 = vmatpush2.msra.mxu0 0.0
      %397 = vmatprep.subr.mxu0 0.0
      %398 = vmatpush2.msra.mxu0 0.0
      %399 = vmatprep.subr.mxu0 0.0
      %400 = vmatpush2.msra.mxu0 0.0
      %401 = vmatprep.subr.mxu0 0.0
      %402 = vmatpush2.msra.mxu0 0.0
      %403 = vmatprep.subr.mxu0 0.0
      %404 = vmatpush2.msra.mxu0 0.0
      %405 = vmatprep.subr.mxu0 0.0
      %406 = vmatpush2.msra.mxu0 0.0
      %407 = vmatprep.subr.mxu0 0.0
      %408 = vmatpush2.msra.mxu0 0.0
      %409 = vmatprep.subr.mxu0 0.0
      %410 = vmatpush2.msra.mxu0 0.0
      %411 = vmatprep.subr.mxu0 0.0
      %412 = vmatpush2.msra.mxu0 0.0
      %413 = vmatprep.mubr.f32.mxu0 0.0
      %414 = vmatmul.mubr.f32.gmra.mxu0 %v344
      %v415 = vpop.f32.mrf.mxu0
      %v416 = vadd.f32 %v341, %v415
      %v417 = vpop.f32.mrf.mxu0
      %418 = vmatprep.mubr.f32.mxu0 0.0
      %419 = vmatmul.mubr.f32.gmra.mxu0 %v347
      %v420 = vpop.f32.mrf.mxu0
      %v421 = vadd.f32 %v341, %v420
      %v422 = vpop.f32.mrf.mxu0
      %423 = vdwg.mxu0
      %v424 = vmax.f32 %v416, 0.0
      %v425 = vmax.f32 %v421, 0.0
      %426 = vst.msk [vmem:[#allocation2] sm:$0xff] %vm244, %v424
      %427 = vst.msk [vmem:[#allocation2 + $0x8] sm:$0xff] %vm244, %v425
    $region61: #{tpu_custom_call.1} parent=1 // pred_fallthru
      _
    %v428 = vld [vmem:[#allocation2] sm:$0xff]
    %v429 = vld [vmem:[#allocation2 + $0x8] sm:$0xff]
    %v430 = vld [vmem:[#allocation11] sm:$0xff]
    %v431 = vld [vmem:[#allocation11 + $0x8] sm:$0xff]
    %v432 = vld [vmem:[#allocation11 + $0x10] sm:$0xff]
    %v433 = vld [vmem:[#allocation11 + $0x18] sm:$0xff]
    %v434 = vld [vmem:[#allocation11 + $0x20] sm:$0xff]
    %v435 = vld [vmem:[#allocation11 + $0x28] sm:$0xff]
    %v436 = vld [vmem:[#allocation11 + $0x30] sm:$0xff]
    %v437 = vld [vmem:[#allocation11 + $0x38] sm:$0xff]
    %v438 = vld [vmem:[#allocation11 + $0x40] sm:$0xff]
    %v439 = vld [vmem:[#allocation11 + $0x48] sm:$0xff]
    %v440 = vld [vmem:[#allocation11 + $0x50] sm:$0xff]
    %v441 = vld [vmem:[#allocation11 + $0x58] sm:$0xff]
    %v442 = vld [vmem:[#allocation11 + $0x60] sm:$0xff]
    %v443 = vld [vmem:[#allocation11 + $0x68] sm:$0xff]
    %v444 = vld [vmem:[#allocation11 + $0x70] sm:$0xff]
    %v445 = vld [vmem:[#allocation11 + $0x78] sm:$0xff]
    %v446 = vld [vmem:[%s123] sm:$0x3]
    %v448 = vlaneseq
    %v449 = vshrl.u32 %v448, 7
    %v450 = vsub.s32 0, %v449
    %v451 = vrot.slane %v446, %v450
    %v452 = vlaneseq
    %v453 = vshrl.u32 %v452, 7
    %v454 = vsub.s32 1, %v453
    %v455 = vrot.slane %v446, %v454
    %vm458 = vcmask 523264
    %v460 = vsel %vm458, %v428, 0
    %v463 = vsel %vm458, %v429, 0
    %465 = vmatprep.subr.mxu0 0.0
    %466 = vmatpush1.msra.mxu0 0.0
    %467 = vmatprep.subr.mxu0 0.0
    %468 = vmatpush1.msra.mxu0 0.0
    %469 = vmatprep.subr.mxu0 0.0
    %470 = vmatpush1.msra.mxu0 0.0
    %471 = vmatprep.subr.mxu0 0.0
    %472 = vmatpush1.msra.mxu0 0.0
    %473 = vmatprep.subr.mxu0 0.0
    %474 = vmatpush1.msra.mxu0 0.0
    %475 = vmatprep.subr.mxu0 0.0
    %476 = vmatpush1.msra.mxu0 0.0
    %477 = vmatprep.subr.mxu0 0.0
    %478 = vmatpush1.msra.mxu0 0.0
    %479 = vmatprep.subr.mxu0 0.0
    %480 = vmatpush1.msra.mxu0 0.0
    %481 = vmatprep.subr.mxu0 %v445
    %482 = vmatpush1.msra.mxu0 %v444
    %483 = vmatprep.subr.mxu0 %v443
    %484 = vmatpush1.msra.mxu0 %v442
    %485 = vmatprep.subr.mxu0 %v441
    %486 = vmatpush1.msra.mxu0 %v440
    %487 = vmatprep.subr.mxu0 %v439
    %488 = vmatpush1.msra.mxu0 %v438
    %489 = vmatprep.subr.mxu0 %v437
    %490 = vmatpush1.msra.mxu0 %v436
    %491 = vmatprep.subr.mxu0 %v435
    %492 = vmatpush1.msra.mxu0 %v434
    %493 = vmatprep.subr.mxu0 %v433
    %494 = vmatpush1.msra.mxu0 %v432
    %495 = vmatprep.subr.mxu0 %v431
    %496 = vmatpush1.msra.mxu0 %v430
    %497 = vmatprep.subr.mxu0 0.0
    %498 = vmatpush2.msra.mxu0 0.0
    %499 = vmatprep.subr.mxu0 0.0
    %500 = vmatpush2.msra.mxu0 0.0
    %501 = vmatprep.subr.mxu0 0.0
    %502 = vmatpush2.msra.mxu0 0.0
    %503 = vmatprep.subr.mxu0 0.0
    %504 = vmatpush2.msra.mxu0 0.0
    %505 = vmatprep.subr.mxu0 0.0
    %506 = vmatpush2.msra.mxu0 0.0
    %507 = vmatprep.subr.mxu0 0.0
    %508 = vmatpush2.msra.mxu0 0.0
    %509 = vmatprep.subr.mxu0 0.0
    %510 = vmatpush2.msra.mxu0 0.0
    %511 = vmatprep.subr.mxu0 0.0
    %512 = vmatpush2.msra.mxu0 0.0
    %513 = vmatprep.subr.mxu0 0.0
    %514 = vmatpush2.msra.mxu0 0.0
    %515 = vmatprep.subr.mxu0 0.0
    %516 = vmatpush2.msra.mxu0 0.0
    %517 = vmatprep.subr.mxu0 0.0
    %518 = vmatpush2.msra.mxu0 0.0
    %519 = vmatprep.subr.mxu0 0.0
    %520 = vmatpush2.msra.mxu0 0.0
    %521 = vmatprep.subr.mxu0 0.0
    %522 = vmatpush2.msra.mxu0 0.0
    %523 = vmatprep.subr.mxu0 0.0
    %524 = vmatpush2.msra.mxu0 0.0
    %525 = vmatprep.subr.mxu0 0.0
    %526 = vmatpush2.msra.mxu0 0.0
    %527 = vmatprep.subr.mxu0 0.0
    %528 = vmatpush2.msra.mxu0 0.0
    %529 = vmatprep.mubr.f32.mxu0 0.0
    %530 = vmatmul.mubr.f32.gmra.mxu0 %v460
    %v531 = vpop.f32.mrf.mxu0
    %v532 = vadd.f32 %v451, %v531
    %v533 = vpop.f32.mrf.mxu0
    %v534 = vadd.f32 %v455, %v533
    %535 = vmatprep.mubr.f32.mxu0 0.0
    %536 = vmatmul.mubr.f32.gmra.mxu0 %v463
    %v537 = vpop.f32.mrf.mxu0
    %v538 = vadd.f32 %v451, %v537
    %v539 = vpop.f32.mrf.mxu0
    %v540 = vadd.f32 %v455, %v539
    %541 = vdwg.mxu0
    %542 = vst [vmem:[#allocation12] sm:$0xff] %v532
    %543 = vst [vmem:[#allocation12 + $0x8] sm:$0xff] %v534
    %544 = vst [vmem:[#allocation12 + $0x10] sm:$0xff] %v538
    %545 = vst [vmem:[#allocation12 + $0x18] sm:$0xff] %v540
    // Predicated region
    $region62: #{tpu_custom_call.1} parent=1 // pred_check
      _
    $region63: #{tpu_custom_call.1} parent=1 // pred_check_branch
      %547 = sbr.rel (0) target = $region65
    $region64: #{tpu_custom_call.1} parent=1 // pred_region
      %s548 = sadd.s32 0, 0
      %s549 = smul.u32 2, %s548
      %s551 = ssub.s32 512, 512
      %552 = vsyncadd [#allocation5], %s551
      %s553 = smul.addr %s549, 128
      %s554 = scalar_lea.hbm %s9, %s553
      %s555 = sshll.u32 [#allocation12], 4
      %s556 = int_to_ptr.vmem [resolvable:$true] %s555
      %561 = dma.vmem_to_hbm [thread:$0]  %s556, 512, %s554, [#allocation5], 256, 256, 16
    $region65: #{tpu_custom_call.1} parent=1 // pred_fallthru
      _
    // Predicated region
    $region66: #{tpu_custom_call.1} parent=1 // pred_check
      _
    $region67: #{tpu_custom_call.1} parent=1 // pred_check_branch
      %563 = sbr.rel (0) target = $region69
    $region68: #{tpu_custom_call.1} parent=1 // pred_region
      %564 = dma.done [#allocation5], 512
    $region69: #{tpu_custom_call.1} parent=1 // pred_fallthru
      _
    %565 = vsyncpa [#allocation4], 1
    %566 = vsyncpa [#allocation7], 1
    %567 = vsyncpa [#allocation10], 1
    %568 = vsyncpa [#allocation5], 1

</llo_original>
